<compile_context>
chip_gen: v7x
topology: tpu7x:2x2x1
jax: 0.10.0
libtpu: 0.0.40
codegen_flags: <defaults>
</compile_context>

<pallas_src>
import functools

import jax
import jax.numpy as jnp
import numpy as np
from jax import lax
from jax.experimental import pallas as pl
from jax.experimental.pallas import tpu as pltpu


def _bottleneck_kernel(x_ref, w1_ref, b1_ref, w2_ref, b2_ref, w3_ref, b3_ref,
                       out_ref, hpad_ref, *, H, W, P, B):
    """One grid step = B images. x_ref block: (B*H*W, Cin=4P) bf16."""
    HW = H * W

    # ---- conv1 (1x1, BN1 scale folded into weights) + bias + ReLU --------
    x = x_ref[...]                                         # (B*HW, 4P) bf16
    h1 = jnp.dot(x, w1_ref[...],
                 preferred_element_type=jnp.float32)       # (B*HW, P) f32
    h1 = jnp.maximum(h1 + b1_ref[...], 0.0)

    # ---- conv2 (3x3, pad=1, stride=1) as a single im2col MXU matmul ------
    # Per image: a flat ((H+4)*W, P) scratch with W-row zero halo bands above
    # and below the interior.  With row-major flattening the value needed at
    # output pixel i = y*W + x for tap (dy, dx) is hpad[i + (dy+2)*W + dx];
    # out-of-row columns are masked (conv padding contributes zero).
    # NOTE: halos are re-zeroed every step (cheap) — a once-only init guarded
    # by program_id==0 breaks on a megacore-split "parallel" grid axis.
    zhalo = jnp.zeros((2 * W, P), jnp.float32)
    for b in range(B):
        hpad_ref[b, pl.ds(0, 2 * W), :] = zhalo                    # top halo
        hpad_ref[b, pl.ds((H + 2) * W, 2 * W), :] = zhalo          # bottom halo
        hpad_ref[b, pl.ds(2 * W, HW), :] = h1[b * HW:(b + 1) * HW, :]

    # Column-validity masks, shared across taps (global flat index % W == x).
    xcol = lax.broadcasted_iota(jnp.int32, (B * HW, 1), 0) % W
    left_ok = xcol >= 1
    right_ok = xcol < W - 1

    cols = []
    for dy in (-1, 0, 1):
        for dx in (-1, 0, 1):
            s = (dy + 2) * W + dx                          # static, >= 0
            if B == 1:
                col = hpad_ref[0, pl.ds(s, HW), :]         # ref slice (f32)
            else:
                col = jnp.concatenate(
                    [hpad_ref[b, pl.ds(s, HW), :] for b in range(B)], axis=0)
            if dx == -1:
                col = jnp.where(left_ok, col, 0.0)
            elif dx == 1:
                col = jnp.where(right_ok, col, 0.0)
            cols.append(col.astype(jnp.bfloat16))          # cast BEFORE concat
    patches = jnp.concatenate(cols, axis=-1)               # (B*HW, 9P) bf16
    h2 = jnp.dot(patches, w2_ref[...],
                 preferred_element_type=jnp.float32)       # (B*HW, P) f32
    h2 = jnp.maximum(h2 + b2_ref[...], 0.0).astype(jnp.bfloat16)

    # ---- conv3 (1x1) + bias ----------------------------------------------
    h3 = jnp.dot(h2, w3_ref[...],
                 preferred_element_type=jnp.float32)       # (B*HW, 4P) f32
    h3 = h3 + b3_ref[...]

    # ---- residual add (f32) + ReLU, bf16 writeback ------------------------
    out = jnp.maximum(h3 + x.astype(jnp.float32), 0.0)
    out_ref[...] = out.astype(out_ref.dtype)


def _pick_vmem_limit_bytes():
    """Generation-aware scoped-VMEM limit: headroom on v7x (64 MiB physical),
    don't starve v5e/v6e (128 MiB)."""
    cap = None
    try:
        cap = getattr(pltpu.get_tpu_info(), "vmem_capacity_bytes", None)
    except Exception:
        cap = None
    if not cap:
        cap = 64 * 1024 * 1024          # conservative fallback (v7x per-TC)
    return int(min(cap * 5 // 8, 100 * 1024 * 1024))


def bottleneck_pallas(x_nhwc, w1, b1, w2, b2, w3, b3, *,
                      out_dtype=jnp.bfloat16, b_tile=None):
    """x_nhwc: (N,H,W,Cin); w1:(Cin,P), w2:(9P,P), w3:(P,4P) bf16 with the BN
    scales pre-folded; b1/b2/b3: (1,C) f32 folded BN biases."""
    N, H, W, Cin = x_nhwc.shape
    P = w1.shape[1]
    assert Cin == 4 * P, "no-downsample Bottleneck requires inplanes == planes*4"
    HW = H * W

    # Fuse several images per grid step for small spatial extents.
    if b_tile is None:
        b_tile = 1
        if HW <= 1024:
            for cand in (8, 4, 2):
                if N % cand == 0:
                    b_tile = cand
                    break
    assert N % b_tile == 0
    assert (b_tile * HW) % 8 == 0, "block sublane dim must be a multiple of 8"
    # (Perf note: W % 8 == 0 keeps dx=0 tap loads sublane-aligned; other W
    #  values remain correct but pay extra XLU relayout on the tap slices.)

    x_flat = x_nhwc.astype(jnp.bfloat16).reshape(N * HW, Cin)   # bf16 HBM read

    kernel = functools.partial(_bottleneck_kernel, H=H, W=W, P=P, B=b_tile)

    full = lambda shape: pl.BlockSpec(shape, lambda n: (0,) * len(shape))
    grid_spec = pltpu.PrefetchScalarGridSpec(
        num_scalar_prefetch=0,
        grid=(N // b_tile,),
        in_specs=[
            pl.BlockSpec((b_tile * HW, Cin), lambda n: (n, 0)),   # x
            full((Cin, P)), full((1, P)),                         # conv1 / bn1
            full((9 * P, P)), full((1, P)),                       # conv2 / bn2
            full((P, 4 * P)), full((1, 4 * P)),                   # conv3 / bn3
        ],
        out_specs=pl.BlockSpec((b_tile * HW, Cin), lambda n: (n, 0)),
        scratch_shapes=[
            pltpu.VMEM((b_tile, (H + 4) * W, P), jnp.float32),    # haloed h1
        ],
    )

    out = pl.pallas_call(
        kernel,
        grid_spec=grid_spec,
        out_shape=jax.ShapeDtypeStruct((N * HW, Cin), out_dtype),
        compiler_params=pltpu.CompilerParams(
            dimension_semantics=("parallel",),
            vmem_limit_bytes=_pick_vmem_limit_bytes()),
    )(x_flat, w1, b1, w2, b2, w3, b3)
    return out.reshape(N, H, W, Cin)


# ---------------------------------------------------------------------------
# Parameter setup (deterministic, synthetic) and pure-JAX reference.
# ---------------------------------------------------------------------------
def fold_bn(gamma, beta, mean, var, eps=1e-5):
    scale = gamma / jnp.sqrt(var + eps)
    bias = beta - mean * scale
    return scale, bias


def make_params(key, inplanes, planes):
    ks = jax.random.split(key, 15)
    f32 = jnp.float32
    p = {}
    # conv weights in PyTorch OIHW convention
    p["w1"] = 0.1 * jax.random.normal(ks[0], (planes, inplanes, 1, 1), f32)
    p["w2"] = 0.1 * jax.random.normal(ks[1], (planes, planes, 3, 3), f32)
    p["w3"] = 0.1 * jax.random.normal(ks[2], (4 * planes, planes, 1, 1), f32)
    # BatchNorm params (inference / running-stats mode)
    for i, c in zip((1, 2, 3), (planes, planes, 4 * planes)):
        base = 3 + (i - 1) * 4
        p[f"g{i}"] = 0.5 + jax.random.uniform(ks[base + 0], (c,), f32)
        p[f"be{i}"] = 0.1 * jax.random.normal(ks[base + 1], (c,), f32)
        p[f"m{i}"] = 0.1 * jax.random.normal(ks[base + 2], (c,), f32)
        p[f"v{i}"] = 0.5 + jax.random.uniform(ks[base + 3], (c,), f32)
    return p


def bottleneck_ref_nchw(x, p):
    """Pure-JAX reference matching PyTorch Bottleneck.forward (eval-mode BN)."""
    dn = ("NCHW", "OIHW", "NCHW")
    conv = lambda a, w, pad: lax.conv_general_dilated(
        a, w, (1, 1), pad, dimension_numbers=dn,
        precision=lax.Precision.HIGHEST)
    bn = lambda a, g, b, m, v: (
        (a - m[None, :, None, None]) / jnp.sqrt(v[None, :, None, None] + 1e-5)
        * g[None, :, None, None] + b[None, :, None, None])
    out = jax.nn.relu(bn(conv(x, p["w1"], "VALID"), p["g1"], p["be1"], p["m1"], p["v1"]))
    out = jax.nn.relu(bn(conv(out, p["w2"], "SAME"), p["g2"], p["be2"], p["m2"], p["v2"]))
    out = bn(conv(out, p["w3"], "VALID"), p["g3"], p["be3"], p["m3"], p["v3"])
    return jax.nn.relu(out + x)


if __name__ == "__main__":
    planes = 32                      # P; 4*P = 128 -> lane-dense channels
    inplanes = planes * 4            # residual add works without downsample
    N, H, W = 2, 8, 8

    key = jax.random.PRNGKey(0)
    kx, kp = jax.random.split(key)
    x_nchw = jax.random.normal(kx, (N, inplanes, H, W), jnp.float32)
    p = make_params(kp, inplanes, planes)

    # Fold BN scales into conv weights (per output channel); keep biases.
    s1, b1 = fold_bn(p["g1"], p["be1"], p["m1"], p["v1"])
    s2, b2 = fold_bn(p["g2"], p["be2"], p["m2"], p["v2"])
    s3, b3 = fold_bn(p["g3"], p["be3"], p["m3"], p["v3"])
    w1k = (jnp.transpose(p["w1"][:, :, 0, 0], (1, 0)) * s1[None, :]
           ).astype(jnp.bfloat16)                                   # (Cin, P)
    w2k = (jnp.transpose(p["w2"], (2, 3, 1, 0)) * s2[None, None, None, :]
           ).reshape(9 * planes, planes).astype(jnp.bfloat16)       # (9P, P)
    w3k = (jnp.transpose(p["w3"][:, :, 0, 0], (1, 0)) * s3[None, :]
           ).astype(jnp.bfloat16)                                   # (P, 4P)
    as2d = lambda v: v.reshape(1, -1).astype(jnp.float32)

    x_nhwc = jnp.transpose(x_nchw, (0, 2, 3, 1))                    # NCHW->NHWC
    out_nhwc = bottleneck_pallas(
        x_nhwc, w1k, as2d(b1), w2k, as2d(b2), w3k, as2d(b3),
        out_dtype=jnp.bfloat16)
    out_nhwc = jax.block_until_ready(out_nhwc)
    out_nchw = jnp.transpose(out_nhwc.astype(jnp.float32), (0, 3, 1, 2))

    ref = bottleneck_ref_nchw(x_nchw, p)
    # bf16 activations + bf16 weights (f32 accumulation) + bf16 output
    # -> accept bf16-class accuracy.
    np.testing.assert_allclose(np.asarray(out_nchw), np.asarray(ref),
                               rtol=4e-2, atol=4e-2)
    print("KERNEL_OK")
</pallas_src>

<mosaic_0001>
module attributes {stable_mosaic.version = 11 : i64} {
  func.func @_bottleneck_kernel(%arg0: i32, %arg1: memref<128x128xbf16, #tpu.memory_space<vmem>>, %arg2: memref<128x32xbf16, #tpu.memory_space<vmem>>, %arg3: memref<1x32xf32, #tpu.memory_space<vmem>>, %arg4: memref<288x32xbf16, #tpu.memory_space<vmem>>, %arg5: memref<1x32xf32, #tpu.memory_space<vmem>>, %arg6: memref<32x128xbf16, #tpu.memory_space<vmem>>, %arg7: memref<1x128xf32, #tpu.memory_space<vmem>>, %arg8: memref<128x128xbf16, #tpu.memory_space<vmem>>, %arg9: memref<2x96x32xf32, #tpu.memory_space<vmem>>) attributes {dimension_semantics = [#tpu.dimension_semantics<parallel>], iteration_bounds = array<i64: 1>, scalar_prefetch = 0 : i64, scratch_operands = 1 : i64, tpu.core_type = #tpu.core_type<tc>, window_params = [{transform_indices = @transform_0, window_bounds = array<i64: 128, 128>}, {pipeline_mode = #tpu.pipeline_mode<synchronous>, transform_indices = @transform_1, window_bounds = array<i64: 128, 32>}, {pipeline_mode = #tpu.pipeline_mode<synchronous>, transform_indices = @transform_2, window_bounds = array<i64: 1, 32>}, {pipeline_mode = #tpu.pipeline_mode<synchronous>, transform_indices = @transform_3, window_bounds = array<i64: 288, 32>}, {pipeline_mode = #tpu.pipeline_mode<synchronous>, transform_indices = @transform_4, window_bounds = array<i64: 1, 32>}, {pipeline_mode = #tpu.pipeline_mode<synchronous>, transform_indices = @transform_5, window_bounds = array<i64: 32, 128>}, {pipeline_mode = #tpu.pipeline_mode<synchronous>, transform_indices = @transform_6, window_bounds = array<i64: 1, 128>}, {transform_indices = @transform_7, window_bounds = array<i64: 128, 128>}]} {
    %c0 = arith.constant 0 : index
    %c0_0 = arith.constant 0 : index
    %0 = vector.load %arg1[%c0, %c0_0] : memref<128x128xbf16, #tpu.memory_space<vmem>>, vector<128x128xbf16>
    %c0_1 = arith.constant 0 : index
    %c0_2 = arith.constant 0 : index
    %1 = vector.load %arg2[%c0_1, %c0_2] : memref<128x32xbf16, #tpu.memory_space<vmem>>, vector<128x32xbf16>
    %cst = arith.constant dense<0.000000e+00> : vector<128x32xf32>
    %2 = tpu.matmul %0, %1, %cst {dimension_numbers = #tpu.dot_dimension_numbers<[1], [0], [0], [1], [0, 0, 1, 1], [], []>} : vector<128x128xbf16>, vector<128x32xbf16>, vector<128x32xf32> -> vector<128x32xf32>
    %c0_3 = arith.constant 0 : index
    %c0_4 = arith.constant 0 : index
    %3 = vector.load %arg3[%c0_3, %c0_4] : memref<1x32xf32, #tpu.memory_space<vmem>>, vector<1x32xf32>
    %4 = vector.broadcast %3 : vector<1x32xf32> to vector<128x32xf32>
    %5 = arith.addf %2, %4 : vector<128x32xf32>
    %cst_5 = arith.constant 0.000000e+00 : f32
    %6 = vector.broadcast %cst_5 : f32 to vector<128x32xf32>
    %7 = arith.maximumf %5, %6 : vector<128x32xf32>
    %cst_6 = arith.constant 0.000000e+00 : f32
    %8 = vector.broadcast %cst_6 : f32 to vector<16x32xf32>
    %c0_7 = arith.constant 0 : index
    %c0_8 = arith.constant 0 : index
    %c0_9 = arith.constant 0 : index
    %9 = vector.load %arg9[%c0_7, %c0_8, %c0_9] : memref<2x96x32xf32, #tpu.memory_space<vmem>>, vector<1x16x32xf32>
    %10 = vector.shape_cast %9 : vector<1x16x32xf32> to vector<16x32xf32>
    %11 = vector.shape_cast %8 : vector<16x32xf32> to vector<1x16x32xf32>
    tpu.vector_store %arg9[%c0_7, %c0_8, %c0_9], %11 {strides = array<i32>} : memref<2x96x32xf32, #tpu.memory_space<vmem>>, vector<1x16x32xf32>,
    %c0_10 = arith.constant 0 : index
    %c80 = arith.constant 80 : index
    %c0_11 = arith.constant 0 : index
    %12 = vector.load %arg9[%c0_10, %c80, %c0_11] : memref<2x96x32xf32, #tpu.memory_space<vmem>>, vector<1x16x32xf32>
    %13 = vector.shape_cast %12 : vector<1x16x32xf32> to vector<16x32xf32>
    %14 = vector.shape_cast %8 : vector<16x32xf32> to vector<1x16x32xf32>
    tpu.vector_store %arg9[%c0_10, %c80, %c0_11], %14 {strides = array<i32>} : memref<2x96x32xf32, #tpu.memory_space<vmem>>, vector<1x16x32xf32>,
    %15 = vector.extract_strided_slice %7 {offsets = [0, 0], sizes = [64, 32], strides = [1, 1]} : vector<128x32xf32> to vector<64x32xf32>
    %c0_12 = arith.constant 0 : index
    %c16 = arith.constant 16 : index
    %c0_13 = arith.constant 0 : index
    %16 = vector.load %arg9[%c0_12, %c16, %c0_13] : memref<2x96x32xf32, #tpu.memory_space<vmem>>, vector<1x64x32xf32>
    %17 = vector.shape_cast %16 : vector<1x64x32xf32> to vector<64x32xf32>
    %18 = vector.shape_cast %15 : vector<64x32xf32> to vector<1x64x32xf32>
    tpu.vector_store %arg9[%c0_12, %c16, %c0_13], %18 {strides = array<i32>} : memref<2x96x32xf32, #tpu.memory_space<vmem>>, vector<1x64x32xf32>,
    %c1 = arith.constant 1 : index
    %c0_14 = arith.constant 0 : index
    %c0_15 = arith.constant 0 : index
    %19 = vector.load %arg9[%c1, %c0_14, %c0_15] : memref<2x96x32xf32, #tpu.memory_space<vmem>>, vector<1x16x32xf32>
    %20 = vector.shape_cast %19 : vector<1x16x32xf32> to vector<16x32xf32>
    %21 = vector.shape_cast %8 : vector<16x32xf32> to vector<1x16x32xf32>
    tpu.vector_store %arg9[%c1, %c0_14, %c0_15], %21 {strides = array<i32>} : memref<2x96x32xf32, #tpu.memory_space<vmem>>, vector<1x16x32xf32>,
    %c1_16 = arith.constant 1 : index
    %c80_17 = arith.constant 80 : index
    %c0_18 = arith.constant 0 : index
    %22 = vector.load %arg9[%c1_16, %c80_17, %c0_18] : memref<2x96x32xf32, #tpu.memory_space<vmem>>, vector<1x16x32xf32>
    %23 = vector.shape_cast %22 : vector<1x16x32xf32> to vector<16x32xf32>
    %24 = vector.shape_cast %8 : vector<16x32xf32> to vector<1x16x32xf32>
    tpu.vector_store %arg9[%c1_16, %c80_17, %c0_18], %24 {strides = array<i32>} : memref<2x96x32xf32, #tpu.memory_space<vmem>>, vector<1x16x32xf32>,
    %25 = vector.extract_strided_slice %7 {offsets = [64, 0], sizes = [64, 32], strides = [1, 1]} : vector<128x32xf32> to vector<64x32xf32>
    %c1_19 = arith.constant 1 : index
    %c16_20 = arith.constant 16 : index
    %c0_21 = arith.constant 0 : index
    %26 = vector.load %arg9[%c1_19, %c16_20, %c0_21] : memref<2x96x32xf32, #tpu.memory_space<vmem>>, vector<1x64x32xf32>
    %27 = vector.shape_cast %26 : vector<1x64x32xf32> to vector<64x32xf32>
    %28 = vector.shape_cast %25 : vector<64x32xf32> to vector<1x64x32xf32>
    tpu.vector_store %arg9[%c1_19, %c16_20, %c0_21], %28 {strides = array<i32>} : memref<2x96x32xf32, #tpu.memory_space<vmem>>, vector<1x64x32xf32>,
    %29 = tpu.iota {dimensions = array<i32: 0>} : vector<128x1xi32>
    %c8_i32 = arith.constant 8 : i32
    %c0_i32 = arith.constant 0 : i32
    %30 = arith.cmpi eq, %c8_i32, %c0_i32 : i32
    %c1_i32 = arith.constant 1 : i32
    %31 = arith.select %30, %c1_i32, %c8_i32 : i32
    %32 = vector.broadcast %31 : i32 to vector<128x1xi32>
    %33 = arith.remsi %29, %32 : vector<128x1xi32>
    %c0_i32_22 = arith.constant 0 : i32
    %34 = vector.broadcast %c0_i32_22 : i32 to vector<128x1xi32>
    %35 = arith.cmpi ne, %33, %34 : vector<128x1xi32>
    %c0_i32_23 = arith.constant 0 : i32
    %36 = vector.broadcast %c0_i32_23 : i32 to vector<128x1xi32>
    %37 = arith.cmpi slt, %33, %36 : vector<128x1xi32>
    %c0_i32_24 = arith.constant 0 : i32
    %38 = arith.cmpi slt, %31, %c0_i32_24 : i32
    %39 = vector.broadcast %38 : i1 to vector<128x1xi1>
    %40 = vector.broadcast %39 : vector<128x1xi1> to vector<128x1xi1>
    %41 = arith.xori %37, %40 : vector<128x1xi1>
    %42 = arith.andi %41, %35 : vector<128x1xi1>
    %43 = vector.broadcast %31 : i32 to vector<128x1xi32>
    %44 = arith.addi %33, %43 : vector<128x1xi32>
    %45 = arith.select %42, %44, %33 : vector<128x1xi1>, vector<128x1xi32>
    %c1_i32_25 = arith.constant 1 : i32
    %46 = vector.broadcast %c1_i32_25 : i32 to vector<128x1xi32>
    %47 = arith.cmpi sge, %45, %46 : vector<128x1xi32>
    %c7_i32 = arith.constant 7 : i32
    %48 = vector.broadcast %c7_i32 : i32 to vector<128x1xi32>
    %49 = arith.cmpi slt, %45, %48 : vector<128x1xi32>
    %c0_26 = arith.constant 0 : index
    %c7 = arith.constant 7 : index
    %c0_27 = arith.constant 0 : index
    %50 = vector.load %arg9[%c0_26, %c7, %c0_27] : memref<2x96x32xf32, #tpu.memory_space<vmem>>, vector<1x64x32xf32>
    %51 = vector.shape_cast %50 : vector<1x64x32xf32> to vector<64x32xf32>
    %c1_28 = arith.constant 1 : index
    %c7_29 = arith.constant 7 : index
    %c0_30 = arith.constant 0 : index
    %52 = vector.load %arg9[%c1_28, %c7_29, %c0_30] : memref<2x96x32xf32, #tpu.memory_space<vmem>>, vector<1x64x32xf32>
    %53 = vector.shape_cast %52 : vector<1x64x32xf32> to vector<64x32xf32>
    %54 = tpu.concatenate %51, %53 in 0 : vector<64x32xf32>, vector<64x32xf32> -> vector<128x32xf32>
    %cst_31 = arith.constant 0.000000e+00 : f32
    %55 = vector.shape_cast %47 : vector<128x1xi1> to vector<128x1xi1>
    %56 = vector.broadcast %55 : vector<128x1xi1> to vector<128x32xi1>
    %57 = vector.broadcast %cst_31 : f32 to vector<128x32xf32>
    %58 = arith.select %56, %54, %57 : vector<128x32xi1>, vector<128x32xf32>
    %59 = arith.truncf %58 : vector<128x32xf32> to vector<128x32xbf16>
    %c0_32 = arith.constant 0 : index
    %c8 = arith.constant 8 : index
    %c0_33 = arith.constant 0 : index
    %60 = vector.load %arg9[%c0_32, %c8, %c0_33] : memref<2x96x32xf32, #tpu.memory_space<vmem>>, vector<1x64x32xf32>
    %61 = vector.shape_cast %60 : vector<1x64x32xf32> to vector<64x32xf32>
    %c1_34 = arith.constant 1 : index
    %c8_35 = arith.constant 8 : index
    %c0_36 = arith.constant 0 : index
    %62 = vector.load %arg9[%c1_34, %c8_35, %c0_36] : memref<2x96x32xf32, #tpu.memory_space<vmem>>, vector<1x64x32xf32>
    %63 = vector.shape_cast %62 : vector<1x64x32xf32> to vector<64x32xf32>
    %64 = tpu.concatenate %61, %63 in 0 : vector<64x32xf32>, vector<64x32xf32> -> vector<128x32xf32>
    %65 = arith.truncf %64 : vector<128x32xf32> to vector<128x32xbf16>
    %c0_37 = arith.constant 0 : index
    %c9 = arith.constant 9 : index
    %c0_38 = arith.constant 0 : index
    %66 = vector.load %arg9[%c0_37, %c9, %c0_38] : memref<2x96x32xf32, #tpu.memory_space<vmem>>, vector<1x64x32xf32>
    %67 = vector.shape_cast %66 : vector<1x64x32xf32> to vector<64x32xf32>
    %c1_39 = arith.constant 1 : index
    %c9_40 = arith.constant 9 : index
    %c0_41 = arith.constant 0 : index
    %68 = vector.load %arg9[%c1_39, %c9_40, %c0_41] : memref<2x96x32xf32, #tpu.memory_space<vmem>>, vector<1x64x32xf32>
    %69 = vector.shape_cast %68 : vector<1x64x32xf32> to vector<64x32xf32>
    %70 = tpu.concatenate %67, %69 in 0 : vector<64x32xf32>, vector<64x32xf32> -> vector<128x32xf32>
    %cst_42 = arith.constant 0.000000e+00 : f32
    %71 = vector.shape_cast %49 : vector<128x1xi1> to vector<128x1xi1>
    %72 = vector.broadcast %71 : vector<128x1xi1> to vector<128x32xi1>
    %73 = vector.broadcast %cst_42 : f32 to vector<128x32xf32>
    %74 = arith.select %72, %70, %73 : vector<128x32xi1>, vector<128x32xf32>
    %75 = arith.truncf %74 : vector<128x32xf32> to vector<128x32xbf16>
    %c0_43 = arith.constant 0 : index
    %c15 = arith.constant 15 : index
    %c0_44 = arith.constant 0 : index
    %76 = vector.load %arg9[%c0_43, %c15, %c0_44] : memref<2x96x32xf32, #tpu.memory_space<vmem>>, vector<1x64x32xf32>
    %77 = vector.shape_cast %76 : vector<1x64x32xf32> to vector<64x32xf32>
    %c1_45 = arith.constant 1 : index
    %c15_46 = arith.constant 15 : index
    %c0_47 = arith.constant 0 : index
    %78 = vector.load %arg9[%c1_45, %c15_46, %c0_47] : memref<2x96x32xf32, #tpu.memory_space<vmem>>, vector<1x64x32xf32>
    %79 = vector.shape_cast %78 : vector<1x64x32xf32> to vector<64x32xf32>
    %80 = tpu.concatenate %77, %79 in 0 : vector<64x32xf32>, vector<64x32xf32> -> vector<128x32xf32>
    %cst_48 = arith.constant 0.000000e+00 : f32
    %81 = vector.shape_cast %47 : vector<128x1xi1> to vector<128x1xi1>
    %82 = vector.broadcast %81 : vector<128x1xi1> to vector<128x32xi1>
    %83 = vector.broadcast %cst_48 : f32 to vector<128x32xf32>
    %84 = arith.select %82, %80, %83 : vector<128x32xi1>, vector<128x32xf32>
    %85 = arith.truncf %84 : vector<128x32xf32> to vector<128x32xbf16>
    %c0_49 = arith.constant 0 : index
    %c16_50 = arith.constant 16 : index
    %c0_51 = arith.constant 0 : index
    %86 = vector.load %arg9[%c0_49, %c16_50, %c0_51] : memref<2x96x32xf32, #tpu.memory_space<vmem>>, vector<1x64x32xf32>
    %87 = vector.shape_cast %86 : vector<1x64x32xf32> to vector<64x32xf32>
    %c1_52 = arith.constant 1 : index
    %c16_53 = arith.constant 16 : index
    %c0_54 = arith.constant 0 : index
    %88 = vector.load %arg9[%c1_52, %c16_53, %c0_54] : memref<2x96x32xf32, #tpu.memory_space<vmem>>, vector<1x64x32xf32>
    %89 = vector.shape_cast %88 : vector<1x64x32xf32> to vector<64x32xf32>
    %90 = tpu.concatenate %87, %89 in 0 : vector<64x32xf32>, vector<64x32xf32> -> vector<128x32xf32>
    %91 = arith.truncf %90 : vector<128x32xf32> to vector<128x32xbf16>
    %c0_55 = arith.constant 0 : index
    %c17 = arith.constant 17 : index
    %c0_56 = arith.constant 0 : index
    %92 = vector.load %arg9[%c0_55, %c17, %c0_56] : memref<2x96x32xf32, #tpu.memory_space<vmem>>, vector<1x64x32xf32>
    %93 = vector.shape_cast %92 : vector<1x64x32xf32> to vector<64x32xf32>
    %c1_57 = arith.constant 1 : index
    %c17_58 = arith.constant 17 : index
    %c0_59 = arith.constant 0 : index
    %94 = vector.load %arg9[%c1_57, %c17_58, %c0_59] : memref<2x96x32xf32, #tpu.memory_space<vmem>>, vector<1x64x32xf32>
    %95 = vector.shape_cast %94 : vector<1x64x32xf32> to vector<64x32xf32>
    %96 = tpu.concatenate %93, %95 in 0 : vector<64x32xf32>, vector<64x32xf32> -> vector<128x32xf32>
    %cst_60 = arith.constant 0.000000e+00 : f32
    %97 = vector.shape_cast %49 : vector<128x1xi1> to vector<128x1xi1>
    %98 = vector.broadcast %97 : vector<128x1xi1> to vector<128x32xi1>
    %99 = vector.broadcast %cst_60 : f32 to vector<128x32xf32>
    %100 = arith.select %98, %96, %99 : vector<128x32xi1>, vector<128x32xf32>
    %101 = arith.truncf %100 : vector<128x32xf32> to vector<128x32xbf16>
    %c0_61 = arith.constant 0 : index
    %c23 = arith.constant 23 : index
    %c0_62 = arith.constant 0 : index
    %102 = vector.load %arg9[%c0_61, %c23, %c0_62] : memref<2x96x32xf32, #tpu.memory_space<vmem>>, vector<1x64x32xf32>
    %103 = vector.shape_cast %102 : vector<1x64x32xf32> to vector<64x32xf32>
    %c1_63 = arith.constant 1 : index
    %c23_64 = arith.constant 23 : index
    %c0_65 = arith.constant 0 : index
    %104 = vector.load %arg9[%c1_63, %c23_64, %c0_65] : memref<2x96x32xf32, #tpu.memory_space<vmem>>, vector<1x64x32xf32>
    %105 = vector.shape_cast %104 : vector<1x64x32xf32> to vector<64x32xf32>
    %106 = tpu.concatenate %103, %105 in 0 : vector<64x32xf32>, vector<64x32xf32> -> vector<128x32xf32>
    %cst_66 = arith.constant 0.000000e+00 : f32
    %107 = vector.shape_cast %47 : vector<128x1xi1> to vector<128x1xi1>
    %108 = vector.broadcast %107 : vector<128x1xi1> to vector<128x32xi1>
    %109 = vector.broadcast %cst_66 : f32 to vector<128x32xf32>
    %110 = arith.select %108, %106, %109 : vector<128x32xi1>, vector<128x32xf32>
    %111 = arith.truncf %110 : vector<128x32xf32> to vector<128x32xbf16>
    %c0_67 = arith.constant 0 : index
    %c24 = arith.constant 24 : index
    %c0_68 = arith.constant 0 : index
    %112 = vector.load %arg9[%c0_67, %c24, %c0_68] : memref<2x96x32xf32, #tpu.memory_space<vmem>>, vector<1x64x32xf32>
    %113 = vector.shape_cast %112 : vector<1x64x32xf32> to vector<64x32xf32>
    %c1_69 = arith.constant 1 : index
    %c24_70 = arith.constant 24 : index
    %c0_71 = arith.constant 0 : index
    %114 = vector.load %arg9[%c1_69, %c24_70, %c0_71] : memref<2x96x32xf32, #tpu.memory_space<vmem>>, vector<1x64x32xf32>
    %115 = vector.shape_cast %114 : vector<1x64x32xf32> to vector<64x32xf32>
    %116 = tpu.concatenate %113, %115 in 0 : vector<64x32xf32>, vector<64x32xf32> -> vector<128x32xf32>
    %117 = arith.truncf %116 : vector<128x32xf32> to vector<128x32xbf16>
    %c0_72 = arith.constant 0 : index
    %c25 = arith.constant 25 : index
    %c0_73 = arith.constant 0 : index
    %118 = vector.load %arg9[%c0_72, %c25, %c0_73] : memref<2x96x32xf32, #tpu.memory_space<vmem>>, vector<1x64x32xf32>
    %119 = vector.shape_cast %118 : vector<1x64x32xf32> to vector<64x32xf32>
    %c1_74 = arith.constant 1 : index
    %c25_75 = arith.constant 25 : index
    %c0_76 = arith.constant 0 : index
    %120 = vector.load %arg9[%c1_74, %c25_75, %c0_76] : memref<2x96x32xf32, #tpu.memory_space<vmem>>, vector<1x64x32xf32>
    %121 = vector.shape_cast %120 : vector<1x64x32xf32> to vector<64x32xf32>
    %122 = tpu.concatenate %119, %121 in 0 : vector<64x32xf32>, vector<64x32xf32> -> vector<128x32xf32>
    %cst_77 = arith.constant 0.000000e+00 : f32
    %123 = vector.shape_cast %49 : vector<128x1xi1> to vector<128x1xi1>
    %124 = vector.broadcast %123 : vector<128x1xi1> to vector<128x32xi1>
    %125 = vector.broadcast %cst_77 : f32 to vector<128x32xf32>
    %126 = arith.select %124, %122, %125 : vector<128x32xi1>, vector<128x32xf32>
    %127 = arith.truncf %126 : vector<128x32xf32> to vector<128x32xbf16>
    %128 = tpu.concatenate %59, %65, %75, %85, %91, %101, %111, %117, %127 in 1 : vector<128x32xbf16>, vector<128x32xbf16>, vector<128x32xbf16>, vector<128x32xbf16>, vector<128x32xbf16>, vector<128x32xbf16>, vector<128x32xbf16>, vector<128x32xbf16>, vector<128x32xbf16> -> vector<128x288xbf16>
    %c0_78 = arith.constant 0 : index
    %c0_79 = arith.constant 0 : index
    %129 = vector.load %arg4[%c0_78, %c0_79] : memref<288x32xbf16, #tpu.memory_space<vmem>>, vector<288x32xbf16>
    %cst_80 = arith.constant dense<0.000000e+00> : vector<128x32xf32>
    %130 = tpu.matmul %128, %129, %cst_80 {dimension_numbers = #tpu.dot_dimension_numbers<[1], [0], [0], [1], [0, 0, 1, 1], [], []>} : vector<128x288xbf16>, vector<288x32xbf16>, vector<128x32xf32> -> vector<128x32xf32>
    %c0_81 = arith.constant 0 : index
    %c0_82 = arith.constant 0 : index
    %131 = vector.load %arg5[%c0_81, %c0_82] : memref<1x32xf32, #tpu.memory_space<vmem>>, vector<1x32xf32>
    %132 = vector.broadcast %131 : vector<1x32xf32> to vector<128x32xf32>
    %133 = arith.addf %130, %132 : vector<128x32xf32>
    %cst_83 = arith.constant 0.000000e+00 : f32
    %134 = vector.broadcast %cst_83 : f32 to vector<128x32xf32>
    %135 = arith.maximumf %133, %134 : vector<128x32xf32>
    %136 = arith.truncf %135 : vector<128x32xf32> to vector<128x32xbf16>
    %c0_84 = arith.constant 0 : index
    %c0_85 = arith.constant 0 : index
    %137 = vector.load %arg6[%c0_84, %c0_85] : memref<32x128xbf16, #tpu.memory_space<vmem>>, vector<32x128xbf16>
    %cst_86 = arith.constant dense<0.000000e+00> : vector<128x128xf32>
    %138 = tpu.matmul %136, %137, %cst_86 {dimension_numbers = #tpu.dot_dimension_numbers<[1], [0], [0], [1], [0, 0, 1, 1], [], []>} : vector<128x32xbf16>, vector<32x128xbf16>, vector<128x128xf32> -> vector<128x128xf32>
    %c0_87 = arith.constant 0 : index
    %c0_88 = arith.constant 0 : index
    %139 = vector.load %arg7[%c0_87, %c0_88] : memref<1x128xf32, #tpu.memory_space<vmem>>, vector<1x128xf32>
    %140 = vector.broadcast %139 : vector<1x128xf32> to vector<128x128xf32>
    %141 = arith.addf %138, %140 : vector<128x128xf32>
    %142 = arith.extf %0 : vector<128x128xbf16> to vector<128x128xf32>
    %143 = arith.addf %141, %142 : vector<128x128xf32>
    %cst_89 = arith.constant 0.000000e+00 : f32
    %144 = vector.broadcast %cst_89 : f32 to vector<128x128xf32>
    %145 = arith.maximumf %143, %144 : vector<128x128xf32>
    %146 = arith.truncf %145 : vector<128x128xf32> to vector<128x128xbf16>
    %c0_90 = arith.constant 0 : index
    %c0_91 = arith.constant 0 : index
    %147 = vector.load %arg8[%c0_90, %c0_91] : memref<128x128xbf16, #tpu.memory_space<vmem>>, vector<128x128xbf16>
    tpu.vector_store %arg8[%c0_90, %c0_91], %146 {strides = array<i32>} : memref<128x128xbf16, #tpu.memory_space<vmem>>, vector<128x128xbf16>,
    return
  }
  func.func @transform_0(%arg0: i32) -> (i32, i32) {
    %c0_i32 = arith.constant 0 : i32
    %c0_i32_0 = arith.constant 0 : i32
    return %arg0, %c0_i32 : i32, i32
  }
  func.func @transform_1(%arg0: i32) -> (i32, i32) {
    %c0_i32 = arith.constant 0 : i32
    %c0_i32_0 = arith.constant 0 : i32
    %c0_i32_1 = arith.constant 0 : i32
    return %c0_i32, %c0_i32_0 : i32, i32
  }
  func.func @transform_2(%arg0: i32) -> (i32, i32) {
    %c0_i32 = arith.constant 0 : i32
    %c0_i32_0 = arith.constant 0 : i32
    %c0_i32_1 = arith.constant 0 : i32
    return %c0_i32, %c0_i32_0 : i32, i32
  }
  func.func @transform_3(%arg0: i32) -> (i32, i32) {
    %c0_i32 = arith.constant 0 : i32
    %c0_i32_0 = arith.constant 0 : i32
    %c0_i32_1 = arith.constant 0 : i32
    return %c0_i32, %c0_i32_0 : i32, i32
  }
  func.func @transform_4(%arg0: i32) -> (i32, i32) {
    %c0_i32 = arith.constant 0 : i32
    %c0_i32_0 = arith.constant 0 : i32
    %c0_i32_1 = arith.constant 0 : i32
    return %c0_i32, %c0_i32_0 : i32, i32
  }
  func.func @transform_5(%arg0: i32) -> (i32, i32) {
    %c0_i32 = arith.constant 0 : i32
    %c0_i32_0 = arith.constant 0 : i32
    %c0_i32_1 = arith.constant 0 : i32
    return %c0_i32, %c0_i32_0 : i32, i32
  }
  func.func @transform_6(%arg0: i32) -> (i32, i32) {
    %c0_i32 = arith.constant 0 : i32
    %c0_i32_0 = arith.constant 0 : i32
    %c0_i32_1 = arith.constant 0 : i32
    return %c0_i32, %c0_i32_0 : i32, i32
  }
  func.func @transform_7(%arg0: i32) -> (i32, i32) {
    %c0_i32 = arith.constant 0 : i32
    %c0_i32_0 = arith.constant 0 : i32
    return %arg0, %c0_i32 : i32, i32
  }
}

</mosaic_0001>

<llo_original>
// kernel: tpu_custom_call.1
$region0: #{tpu_custom_call.1}
  #allocation0 [shape = 'u32[]', space=smem, size = 0x4, offset = 0x4, fixed_abs, tag = 'smem constant byte address 0x4 - core index']
  #allocation1 [shape = 'u32[144,128]{1,0:T(1,128)}', space=vmem, size = 0x12000, scoped, tag = 'internal scratch']
  #allocation2 [shape = 'f32[2,96,32]{2,1,0:T(8,128)}', space=vmem, size = 0x18000, scoped, tag = 'scratch operand']
  %s0 = inlined_call_operand.vmem [shape: bf16[128,128], index: 0, kind: input, shape index: {}]
  %s1 = inlined_call_operand.vmem [shape: bf16[128,32], index: 1, kind: input, shape index: {}]
  %s2 = inlined_call_operand.vmem [shape: f32[1,32], index: 2, kind: input, shape index: {}]
  %s3 = inlined_call_operand.vmem [shape: bf16[288,32], index: 3, kind: input, shape index: {}]
  %s4 = inlined_call_operand.vmem [shape: f32[1,32], index: 4, kind: input, shape index: {}]
  %s5 = inlined_call_operand.vmem [shape: bf16[32,128], index: 5, kind: input, shape index: {}]
  %s6 = inlined_call_operand.vmem [shape: f32[1,128], index: 6, kind: input, shape index: {}]
  %s7 = inlined_call_operand.hbm [shape: bf16[128,128], index: 7, kind: output, shape index: {}]
  %s8 = sld [smem:[#allocation0]]
  $region38: #{tpu_custom_call.1} parent=0
    _
  %s10 = ssub.s32 1, %s8
  %s11 = scalar_select 0, %s10, %s8
  $region1: #{tpu_custom_call.1} parent=0
    #allocation3 [shape = 'u8[32768]{0}', space=vmem, size = 0x8000, scoped, tag = 'output window, operand 0, single buffered']
    #allocation4 [shape = 's32[1]{0}', space=sflag, size = 0x4, scoped, tag = 'scoped memory for tpu_custom_call.1']
    %12 = vsyncpa [#allocation4], 0
    // Predicated region
    $region2: #{tpu_custom_call.1} parent=1 // pred_check
      _
    $region3: #{tpu_custom_call.1} parent=1 // pred_check_branch
      %14 = sbr.rel (0) target = $region5
    $region4: #{tpu_custom_call.1} parent=1 // pred_region
      _
    $region5: #{tpu_custom_call.1} parent=1 // pred_fallthru
      _
    // Predicated region
    $region6: #{tpu_custom_call.1} parent=1 // pred_check
      _
    $region7: #{tpu_custom_call.1} parent=1 // pred_check_branch
      %16 = sbr.rel (0) target = $region9
    $region8: #{tpu_custom_call.1} parent=1 // pred_region
      _
    $region9: #{tpu_custom_call.1} parent=1 // pred_fallthru
      _
    // Predicated region
    $region10: #{tpu_custom_call.1} parent=1 // pred_check
      _
    $region11: #{tpu_custom_call.1} parent=1 // pred_check_branch
      %18 = sbr.rel (0) target = $region13
    $region12: #{tpu_custom_call.1} parent=1 // pred_region
      _
    $region13: #{tpu_custom_call.1} parent=1 // pred_fallthru
      _
    // Predicated region
    $region14: #{tpu_custom_call.1} parent=1 // pred_check
      _
    $region15: #{tpu_custom_call.1} parent=1 // pred_check_branch
      %20 = sbr.rel (0) target = $region17
    $region16: #{tpu_custom_call.1} parent=1 // pred_region
      _
    $region17: #{tpu_custom_call.1} parent=1 // pred_fallthru
      _
    // Predicated region
    $region18: #{tpu_custom_call.1} parent=1 // pred_check
      _
    $region19: #{tpu_custom_call.1} parent=1 // pred_check_branch
      %22 = sbr.rel (0) target = $region21
    $region20: #{tpu_custom_call.1} parent=1 // pred_region
      _
    $region21: #{tpu_custom_call.1} parent=1 // pred_fallthru
      _
    // Predicated region
    $region22: #{tpu_custom_call.1} parent=1 // pred_check
      _
    $region23: #{tpu_custom_call.1} parent=1 // pred_check_branch
      %24 = sbr.rel (0) target = $region25
    $region24: #{tpu_custom_call.1} parent=1 // pred_region
      _
    $region25: #{tpu_custom_call.1} parent=1 // pred_fallthru
      _
    // Predicated region
    $region26: #{tpu_custom_call.1} parent=1 // pred_check
      _
    $region27: #{tpu_custom_call.1} parent=1 // pred_check_branch
      %26 = sbr.rel (0) target = $region29
    $region28: #{tpu_custom_call.1} parent=1 // pred_region
      _
    $region29: #{tpu_custom_call.1} parent=1 // pred_fallthru
      _
    %v28 = vld [vmem:[%s0] sm:$0xf]
    %v29 = vld [vmem:[%s0 + $0x4] sm:$0xf]
    %v30 = vld [vmem:[%s0 + $0x8] sm:$0xf]
    %v31 = vld [vmem:[%s0 + $0xc] sm:$0xf]
    %v32 = vld [vmem:[%s0 + $0x10] sm:$0xf]
    %v33 = vld [vmem:[%s0 + $0x14] sm:$0xf]
    %v34 = vld [vmem:[%s0 + $0x18] sm:$0xf]
    %v35 = vld [vmem:[%s0 + $0x1c] sm:$0xf]
    %v36 = vld [vmem:[%s0 + $0x20] sm:$0xf]
    %v37 = vld [vmem:[%s0 + $0x24] sm:$0xf]
    %v38 = vld [vmem:[%s0 + $0x28] sm:$0xf]
    %v39 = vld [vmem:[%s0 + $0x2c] sm:$0xf]
    %v40 = vld [vmem:[%s0 + $0x30] sm:$0xf]
    %v41 = vld [vmem:[%s0 + $0x34] sm:$0xf]
    %v42 = vld [vmem:[%s0 + $0x38] sm:$0xf]
    %v43 = vld [vmem:[%s0 + $0x3c] sm:$0xf]
    %v44 = vld [vmem:[%s1] sm:$0xf]
    %v45 = vld [vmem:[%s1 + $0x4] sm:$0xf]
    %v46 = vld [vmem:[%s1 + $0x8] sm:$0xf]
    %v47 = vld [vmem:[%s1 + $0xc] sm:$0xf]
    %v48 = vld [vmem:[%s1 + $0x10] sm:$0xf]
    %v49 = vld [vmem:[%s1 + $0x14] sm:$0xf]
    %v50 = vld [vmem:[%s1 + $0x18] sm:$0xf]
    %v51 = vld [vmem:[%s1 + $0x1c] sm:$0xf]
    %v52 = vld [vmem:[%s1 + $0x20] sm:$0xf]
    %v53 = vld [vmem:[%s1 + $0x24] sm:$0xf]
    %v54 = vld [vmem:[%s1 + $0x28] sm:$0xf]
    %v55 = vld [vmem:[%s1 + $0x2c] sm:$0xf]
    %v56 = vld [vmem:[%s1 + $0x30] sm:$0xf]
    %v57 = vld [vmem:[%s1 + $0x34] sm:$0xf]
    %v58 = vld [vmem:[%s1 + $0x38] sm:$0xf]
    %v59 = vld [vmem:[%s1 + $0x3c] sm:$0xf]
    %v60 = vld [vmem:[%s2] sm:$0x1]
    %v62 = vlaneseq
    %v63 = vshrl.u32 %v62, 7
    %v64 = vsub.s32 0, %v63
    %v65 = vrot.slane %v60, %v64
    %v83 = vunpack.c.l.b16 %v28
    %v84 = vunpack.c.l.b16 %v29
    %v85 = vunpack.c.l.b16 %v30
    %v86 = vunpack.c.l.b16 %v31
    %v87 = vunpack.c.l.b16 %v32
    %v88 = vunpack.c.l.b16 %v33
    %v89 = vunpack.c.l.b16 %v34
    %v90 = vunpack.c.l.b16 %v35
    %v91 = vunpack.c.l.b16 %v36
    %v92 = vunpack.c.l.b16 %v37
    %v93 = vunpack.c.l.b16 %v38
    %v94 = vunpack.c.l.b16 %v39
    %v95 = vunpack.c.l.b16 %v40
    %v96 = vunpack.c.l.b16 %v41
    %v97 = vunpack.c.l.b16 %v42
    %v98 = vunpack.c.l.b16 %v43
    %v99 = vpack.c.b16 %v84, %v83
    %v100 = vpack.c.b16 %v86, %v85
    %v101 = vpack.c.b16 %v88, %v87
    %v102 = vpack.c.b16 %v90, %v89
    %v103 = vpack.c.b16 %v92, %v91
    %v104 = vpack.c.b16 %v94, %v93
    %v105 = vpack.c.b16 %v96, %v95
    %v106 = vpack.c.b16 %v98, %v97
    %v131 = vunpack.c.l.b16 %v44
    %v132 = vunpack.c.l.b16 %v45
    %v133 = vunpack.c.l.b16 %v46
    %v134 = vunpack.c.l.b16 %v47
    %v135 = vunpack.c.l.b16 %v48
    %v136 = vunpack.c.l.b16 %v49
    %v137 = vunpack.c.l.b16 %v50
    %v138 = vunpack.c.l.b16 %v51
    %v139 = vunpack.c.l.b16 %v52
    %v140 = vunpack.c.l.b16 %v53
    %v141 = vunpack.c.l.b16 %v54
    %v142 = vunpack.c.l.b16 %v55
    %v143 = vunpack.c.l.b16 %v56
    %v144 = vunpack.c.l.b16 %v57
    %v145 = vunpack.c.l.b16 %v58
    %v146 = vunpack.c.l.b16 %v59
    %v147 = vpack.c.b16 %v132, %v131
    %v148 = vpack.c.b16 %v134, %v133
    %v149 = vpack.c.b16 %v136, %v135
    %v150 = vpack.c.b16 %v138, %v137
    %v151 = vpack.c.b16 %v140, %v139
    %v152 = vpack.c.b16 %v142, %v141
    %v153 = vpack.c.b16 %v144, %v143
    %v154 = vpack.c.b16 %v146, %v145
    %163 = vmatprep.subr.bf16.mxu0 0
    %164 = vmatpush1.bf16.msra.mxu0 %v147
    %165 = vmatprep.subr.bf16.mxu0 0
    %166 = vmatpush1.bf16.msra.mxu0 %v148
    %167 = vmatprep.subr.bf16.mxu0 0
    %168 = vmatpush1.bf16.msra.mxu0 %v149
    %169 = vmatprep.subr.bf16.mxu0 0
    %170 = vmatpush1.bf16.msra.mxu0 %v150
    %171 = vmatprep.subr.bf16.mxu0 0
    %172 = vmatpush1.bf16.msra.mxu0 %v151
    %173 = vmatprep.subr.bf16.mxu0 0
    %174 = vmatpush1.bf16.msra.mxu0 %v152
    %175 = vmatprep.subr.bf16.mxu0 0
    %176 = vmatpush1.bf16.msra.mxu0 %v153
    %177 = vmatprep.subr.bf16.mxu0 0
    %178 = vmatpush1.bf16.msra.mxu0 %v154
    %179 = vmatprep.subr.bf16.mxu0 0
    %180 = vmatpush1.bf16.msra.mxu0 0
    %181 = vmatprep.subr.bf16.mxu0 0
    %182 = vmatpush1.bf16.msra.mxu0 0
    %183 = vmatprep.subr.bf16.mxu0 0
    %184 = vmatpush1.bf16.msra.mxu0 0
    %185 = vmatprep.subr.bf16.mxu0 0
    %186 = vmatpush1.bf16.msra.mxu0 0
    %187 = vmatprep.subr.bf16.mxu0 0
    %188 = vmatpush1.bf16.msra.mxu0 0
    %189 = vmatprep.subr.bf16.mxu0 0
    %190 = vmatpush1.bf16.msra.mxu0 0
    %191 = vmatprep.subr.bf16.mxu0 0
    %192 = vmatpush1.bf16.msra.mxu0 0
    %193 = vmatprep.subr.bf16.mxu0 0
    %194 = vmatpush1.bf16.msra.mxu0 0
    %195 = vmatprep.mubr.bf16.mxu0 0
    %196 = vmatmul.mubr.bf16.gmra.mrb[0].mxu0 %v99
    %v197 = vpop.f32.mrb[0].mxu0
    %v198 = vadd.f32 %v65, %v197
    %v199 = vpop.f32.mrb[0].mxu0
    %v200 = vpop.f32.mrb[0].mxu0
    %v201 = vadd.f32 %v65, %v200
    %v202 = vpop.f32.mrb[0].mxu0
    %203 = vmatprep.mubr.bf16.mxu0 0
    %204 = vmatmul.mubr.bf16.gmra.mrb[0].mxu0 %v100
    %v205 = vpop.f32.mrb[0].mxu0
    %v206 = vadd.f32 %v65, %v205
    %v207 = vpop.f32.mrb[0].mxu0
    %v208 = vpop.f32.mrb[0].mxu0
    %v209 = vadd.f32 %v65, %v208
    %v210 = vpop.f32.mrb[0].mxu0
    %211 = vmatprep.mubr.bf16.mxu0 0
    %212 = vmatmul.mubr.bf16.gmra.mrb[0].mxu0 %v101
    %v213 = vpop.f32.mrb[0].mxu0
    %v214 = vadd.f32 %v65, %v213
    %v215 = vpop.f32.mrb[0].mxu0
    %v216 = vpop.f32.mrb[0].mxu0
    %v217 = vadd.f32 %v65, %v216
    %v218 = vpop.f32.mrb[0].mxu0
    %219 = vmatprep.mubr.bf16.mxu0 0
    %220 = vmatmul.mubr.bf16.gmra.mrb[0].mxu0 %v102
    %v221 = vpop.f32.mrb[0].mxu0
    %v222 = vadd.f32 %v65, %v221
    %v223 = vpop.f32.mrb[0].mxu0
    %v224 = vpop.f32.mrb[0].mxu0
    %v225 = vadd.f32 %v65, %v224
    %v226 = vpop.f32.mrb[0].mxu0
    %227 = vmatprep.mubr.bf16.mxu0 0
    %228 = vmatmul.mubr.bf16.gmra.mrb[0].mxu0 %v103
    %v229 = vpop.f32.mrb[0].mxu0
    %v230 = vadd.f32 %v65, %v229
    %v231 = vpop.f32.mrb[0].mxu0
    %v232 = vpop.f32.mrb[0].mxu0
    %v233 = vadd.f32 %v65, %v232
    %v234 = vpop.f32.mrb[0].mxu0
    %235 = vmatprep.mubr.bf16.mxu0 0
    %236 = vmatmul.mubr.bf16.gmra.mrb[0].mxu0 %v104
    %v237 = vpop.f32.mrb[0].mxu0
    %v238 = vadd.f32 %v65, %v237
    %v239 = vpop.f32.mrb[0].mxu0
    %v240 = vpop.f32.mrb[0].mxu0
    %v241 = vadd.f32 %v65, %v240
    %v242 = vpop.f32.mrb[0].mxu0
    %243 = vmatprep.mubr.bf16.mxu0 0
    %244 = vmatmul.mubr.bf16.gmra.mrb[0].mxu0 %v105
    %v245 = vpop.f32.mrb[0].mxu0
    %v246 = vadd.f32 %v65, %v245
    %v247 = vpop.f32.mrb[0].mxu0
    %v248 = vpop.f32.mrb[0].mxu0
    %v249 = vadd.f32 %v65, %v248
    %v250 = vpop.f32.mrb[0].mxu0
    %251 = vmatprep.mubr.bf16.mxu0 0
    %252 = vmatmul.mubr.bf16.gmra.mrb[0].mxu0 %v106
    %v253 = vpop.f32.mrb[0].mxu0
    %v254 = vadd.f32 %v65, %v253
    %v255 = vpop.f32.mrb[0].mxu0
    %v256 = vpop.f32.mrb[0].mxu0
    %v257 = vadd.f32 %v65, %v256
    %v258 = vpop.f32.mrb[0].mxu0
    %259 = vdwg.mxu0
    %v260 = vmax.f32 %v198, 0.0
    %v261 = vmax.f32 %v201, 0.0
    %v262 = vmax.f32 %v206, 0.0
    %v263 = vmax.f32 %v209, 0.0
    %v264 = vmax.f32 %v214, 0.0
    %v265 = vmax.f32 %v217, 0.0
    %v266 = vmax.f32 %v222, 0.0
    %v267 = vmax.f32 %v225, 0.0
    %v268 = vmax.f32 %v230, 0.0
    %v269 = vmax.f32 %v233, 0.0
    %v270 = vmax.f32 %v238, 0.0
    %v271 = vmax.f32 %v241, 0.0
    %v272 = vmax.f32 %v246, 0.0
    %v273 = vmax.f32 %v249, 0.0
    %v274 = vmax.f32 %v254, 0.0
    %v275 = vmax.f32 %v257, 0.0
    %vm276 = vcmask 261120
    %277 = vst.msk [vmem:[#allocation2] sm:$0xff] %vm276, 0.0
    %278 = vst.msk [vmem:[#allocation2 + $0x8] sm:$0xff] %vm276, 0.0
    %279 = vst.msk [vmem:[#allocation2 + $0x50] sm:$0xff] %vm276, 0.0
    %280 = vst.msk [vmem:[#allocation2 + $0x58] sm:$0xff] %vm276, 0.0
    %281 = vst.msk [vmem:[#allocation2 + $0x10] sm:$0xff] %vm276, %v260
    %282 = vst.msk [vmem:[#allocation2 + $0x18] sm:$0xff] %vm276, %v261
    %283 = vst.msk [vmem:[#allocation2 + $0x20] sm:$0xff] %vm276, %v262
    %284 = vst.msk [vmem:[#allocation2 + $0x28] sm:$0xff] %vm276, %v263
    %285 = vst.msk [vmem:[#allocation2 + $0x30] sm:$0xff] %vm276, %v264
    %286 = vst.msk [vmem:[#allocation2 + $0x38] sm:$0xff] %vm276, %v265
    %287 = vst.msk [vmem:[#allocation2 + $0x40] sm:$0xff] %vm276, %v266
    %288 = vst.msk [vmem:[#allocation2 + $0x48] sm:$0xff] %vm276, %v267
    %s289 = scalar_lea.vmem [#allocation2], 96
    %290 = vst.msk [vmem:[%s289] sm:$0xff] %vm276, 0.0
    %291 = vst.msk [vmem:[%s289 + $0x8] sm:$0xff] %vm276, 0.0
    %292 = vst.msk [vmem:[%s289 + $0x50] sm:$0xff] %vm276, 0.0
    %293 = vst.msk [vmem:[%s289 + $0x58] sm:$0xff] %vm276, 0.0
    %294 = vst.msk [vmem:[%s289 + $0x10] sm:$0xff] %vm276, %v268
    %295 = vst.msk [vmem:[%s289 + $0x18] sm:$0xff] %vm276, %v269
    %296 = vst.msk [vmem:[%s289 + $0x20] sm:$0xff] %vm276, %v270
    %297 = vst.msk [vmem:[%s289 + $0x28] sm:$0xff] %vm276, %v271
    %298 = vst.msk [vmem:[%s289 + $0x30] sm:$0xff] %vm276, %v272
    %299 = vst.msk [vmem:[%s289 + $0x38] sm:$0xff] %vm276, %v273
    %300 = vst.msk [vmem:[%s289 + $0x40] sm:$0xff] %vm276, %v274
    %301 = vst.msk [vmem:[%s289 + $0x48] sm:$0xff] %vm276, %v275
    %v302 = vlaneseq
    %v303 = vshrl.u32 %v302, 7
    %v304 = vadd.s32 %v303, 8
    %v305 = vadd.s32 %v303, 16
    %v306 = vadd.s32 %v303, 24
    %v307 = vadd.s32 %v303, 32
    %v308 = vadd.s32 %v303, 40
    %v309 = vadd.s32 %v303, 48
    %v310 = vadd.s32 %v303, 56
    %v311 = vadd.s32 %v303, 64
    %v312 = vadd.s32 %v303, 72
    %v313 = vadd.s32 %v303, 80
    %v314 = vadd.s32 %v303, 88
    %v315 = vadd.s32 %v303, 96
    %v316 = vadd.s32 %v303, 104
    %v317 = vadd.s32 %v303, 112
    %v318 = vadd.s32 %v303, 120
    %vm319 = vcmp.lt.s32.totalorder %v303, 0
    %v320 = vsub.s32 0, %v303
    %v321 = vsel %vm319, %v320, %v303
    %v322 = vshrl.u32 %v321, 3
    %v323 = vand.u32 %v321, 7
    %v324 = vsub.s32 0, %v323
    %v325 = vsel %vm319, %v324, %v323
    %vm326 = vcmp.lt.s32.totalorder %v304, 0
    %v327 = vsub.s32 0, %v304
    %v328 = vsel %vm326, %v327, %v304
    %v329 = vshrl.u32 %v328, 3
    %v330 = vand.u32 %v328, 7
    %v331 = vsub.s32 0, %v330
    %v332 = vsel %vm326, %v331, %v330
    %vm333 = vcmp.lt.s32.totalorder %v305, 0
    %v334 = vsub.s32 0, %v305
    %v335 = vsel %vm333, %v334, %v305
    %v336 = vshrl.u32 %v335, 3
    %v337 = vand.u32 %v335, 7
    %v338 = vsub.s32 0, %v337
    %v339 = vsel %vm333, %v338, %v337
    %vm340 = vcmp.lt.s32.totalorder %v306, 0
    %v341 = vsub.s32 0, %v306
    %v342 = vsel %vm340, %v341, %v306
    %v343 = vshrl.u32 %v342, 3
    %v344 = vand.u32 %v342, 7
    %v345 = vsub.s32 0, %v344
    %v346 = vsel %vm340, %v345, %v344
    %vm347 = vcmp.lt.s32.totalorder %v307, 0
    %v348 = vsub.s32 0, %v307
    %v349 = vsel %vm347, %v348, %v307
    %v350 = vshrl.u32 %v349, 3
    %v351 = vand.u32 %v349, 7
    %v352 = vsub.s32 0, %v351
    %v353 = vsel %vm347, %v352, %v351
    %vm354 = vcmp.lt.s32.totalorder %v308, 0
    %v355 = vsub.s32 0, %v308
    %v356 = vsel %vm354, %v355, %v308
    %v357 = vshrl.u32 %v356, 3
    %v358 = vand.u32 %v356, 7
    %v359 = vsub.s32 0, %v358
    %v360 = vsel %vm354, %v359, %v358
    %vm361 = vcmp.lt.s32.totalorder %v309, 0
    %v362 = vsub.s32 0, %v309
    %v363 = vsel %vm361, %v362, %v309
    %v364 = vshrl.u32 %v363, 3
    %v365 = vand.u32 %v363, 7
    %v366 = vsub.s32 0, %v365
    %v367 = vsel %vm361, %v366, %v365
    %vm368 = vcmp.lt.s32.totalorder %v310, 0
    %v369 = vsub.s32 0, %v310
    %v370 = vsel %vm368, %v369, %v310
    %v371 = vshrl.u32 %v370, 3
    %v372 = vand.u32 %v370, 7
    %v373 = vsub.s32 0, %v372
    %v374 = vsel %vm368, %v373, %v372
    %vm375 = vcmp.lt.s32.totalorder %v311, 0
    %v376 = vsub.s32 0, %v311
    %v377 = vsel %vm375, %v376, %v311
    %v378 = vshrl.u32 %v377, 3
    %v379 = vand.u32 %v377, 7
    %v380 = vsub.s32 0, %v379
    %v381 = vsel %vm375, %v380, %v379
    %vm382 = vcmp.lt.s32.totalorder %v312, 0
    %v383 = vsub.s32 0, %v312
    %v384 = vsel %vm382, %v383, %v312
    %v385 = vshrl.u32 %v384, 3
    %v386 = vand.u32 %v384, 7
    %v387 = vsub.s32 0, %v386
    %v388 = vsel %vm382, %v387, %v386
    %vm389 = vcmp.lt.s32.totalorder %v313, 0
    %v390 = vsub.s32 0, %v313
    %v391 = vsel %vm389, %v390, %v313
    %v392 = vshrl.u32 %v391, 3
    %v393 = vand.u32 %v391, 7
    %v394 = vsub.s32 0, %v393
    %v395 = vsel %vm389, %v394, %v393
    %vm396 = vcmp.lt.s32.totalorder %v314, 0
    %v397 = vsub.s32 0, %v314
    %v398 = vsel %vm396, %v397, %v314
    %v399 = vshrl.u32 %v398, 3
    %v400 = vand.u32 %v398, 7
    %v401 = vsub.s32 0, %v400
    %v402 = vsel %vm396, %v401, %v400
    %vm403 = vcmp.lt.s32.totalorder %v315, 0
    %v404 = vsub.s32 0, %v315
    %v405 = vsel %vm403, %v404, %v315
    %v406 = vshrl.u32 %v405, 3
    %v407 = vand.u32 %v405, 7
    %v408 = vsub.s32 0, %v407
    %v409 = vsel %vm403, %v408, %v407
    %vm410 = vcmp.lt.s32.totalorder %v316, 0
    %v411 = vsub.s32 0, %v316
    %v412 = vsel %vm410, %v411, %v316
    %v413 = vshrl.u32 %v412, 3
    %v414 = vand.u32 %v412, 7
    %v415 = vsub.s32 0, %v414
    %v416 = vsel %vm410, %v415, %v414
    %vm417 = vcmp.lt.s32.totalorder %v317, 0
    %v418 = vsub.s32 0, %v317
    %v419 = vsel %vm417, %v418, %v317
    %v420 = vshrl.u32 %v419, 3
    %v421 = vand.u32 %v419, 7
    %v422 = vsub.s32 0, %v421
    %v423 = vsel %vm417, %v422, %v421
    %vm424 = vcmp.lt.s32.totalorder %v318, 0
    %v425 = vsub.s32 0, %v318
    %v426 = vsel %vm424, %v425, %v318
    %v427 = vshrl.u32 %v426, 3
    %v428 = vand.u32 %v426, 7
    %v429 = vsub.s32 0, %v428
    %v430 = vsel %vm424, %v429, %v428
    %vm431 = vcmp.ne.s32.totalorder %v325, 0
    %vm432 = vcmp.ne.s32.totalorder %v332, 0
    %vm433 = vcmp.ne.s32.totalorder %v339, 0
    %vm434 = vcmp.ne.s32.totalorder %v346, 0
    %vm435 = vcmp.ne.s32.totalorder %v353, 0
    %vm436 = vcmp.ne.s32.totalorder %v360, 0
    %vm437 = vcmp.ne.s32.totalorder %v367, 0
    %vm438 = vcmp.ne.s32.totalorder %v374, 0
    %vm439 = vcmp.ne.s32.totalorder %v381, 0
    %vm440 = vcmp.ne.s32.totalorder %v388, 0
    %vm441 = vcmp.ne.s32.totalorder %v395, 0
    %vm442 = vcmp.ne.s32.totalorder %v402, 0
    %vm443 = vcmp.ne.s32.totalorder %v409, 0
    %vm444 = vcmp.ne.s32.totalorder %v416, 0
    %vm445 = vcmp.ne.s32.totalorder %v423, 0
    %vm446 = vcmp.ne.s32.totalorder %v430, 0
    %vm447 = vcmp.lt.s32.totalorder %v325, 0
    %vm448 = vcmp.lt.s32.totalorder %v332, 0
    %vm449 = vcmp.lt.s32.totalorder %v339, 0
    %vm450 = vcmp.lt.s32.totalorder %v346, 0
    %vm451 = vcmp.lt.s32.totalorder %v353, 0
    %vm452 = vcmp.lt.s32.totalorder %v360, 0
    %vm453 = vcmp.lt.s32.totalorder %v367, 0
    %vm454 = vcmp.lt.s32.totalorder %v374, 0
    %vm455 = vcmp.lt.s32.totalorder %v381, 0
    %vm456 = vcmp.lt.s32.totalorder %v388, 0
    %vm457 = vcmp.lt.s32.totalorder %v395, 0
    %vm458 = vcmp.lt.s32.totalorder %v402, 0
    %vm459 = vcmp.lt.s32.totalorder %v409, 0
    %vm460 = vcmp.lt.s32.totalorder %v416, 0
    %vm461 = vcmp.lt.s32.totalorder %v423, 0
    %vm462 = vcmp.lt.s32.totalorder %v430, 0
    %vm463 = vmand %vm447, %vm431
    %vm464 = vmand %vm448, %vm432
    %vm465 = vmand %vm449, %vm433
    %vm466 = vmand %vm450, %vm434
    %vm467 = vmand %vm451, %vm435
    %vm468 = vmand %vm452, %vm436
    %vm469 = vmand %vm453, %vm437
    %vm470 = vmand %vm454, %vm438
    %vm471 = vmand %vm455, %vm439
    %vm472 = vmand %vm456, %vm440
    %vm473 = vmand %vm457, %vm441
    %vm474 = vmand %vm458, %vm442
    %vm475 = vmand %vm459, %vm443
    %vm476 = vmand %vm460, %vm444
    %vm477 = vmand %vm461, %vm445
    %vm478 = vmand %vm462, %vm446
    %v479 = vadd.s32 %v325, 8
    %v480 = vadd.s32 %v332, 8
    %v481 = vadd.s32 %v339, 8
    %v482 = vadd.s32 %v346, 8
    %v483 = vadd.s32 %v353, 8
    %v484 = vadd.s32 %v360, 8
    %v485 = vadd.s32 %v367, 8
    %v486 = vadd.s32 %v374, 8
    %v487 = vadd.s32 %v381, 8
    %v488 = vadd.s32 %v388, 8
    %v489 = vadd.s32 %v395, 8
    %v490 = vadd.s32 %v402, 8
    %v491 = vadd.s32 %v409, 8
    %v492 = vadd.s32 %v416, 8
    %v493 = vadd.s32 %v423, 8
    %v494 = vadd.s32 %v430, 8
    %v495 = vsel %vm463, %v479, %v325
    %v496 = vsel %vm464, %v480, %v332
    %v497 = vsel %vm465, %v481, %v339
    %v498 = vsel %vm466, %v482, %v346
    %v499 = vsel %vm467, %v483, %v353
    %v500 = vsel %vm468, %v484, %v360
    %v501 = vsel %vm469, %v485, %v367
    %v502 = vsel %vm470, %v486, %v374
    %v503 = vsel %vm471, %v487, %v381
    %v504 = vsel %vm472, %v488, %v388
    %v505 = vsel %vm473, %v489, %v395
    %v506 = vsel %vm474, %v490, %v402
    %v507 = vsel %vm475, %v491, %v409
    %v508 = vsel %vm476, %v492, %v416
    %v509 = vsel %vm477, %v493, %v423
    %v510 = vsel %vm478, %v494, %v430
    %vm511 = vcmp.ge.s32.totalorder %v495, 1
    %vm512 = vcmp.ge.s32.totalorder %v496, 1
    %vm513 = vcmp.ge.s32.totalorder %v497, 1
    %vm514 = vcmp.ge.s32.totalorder %v498, 1
    %vm515 = vcmp.ge.s32.totalorder %v499, 1
    %vm516 = vcmp.ge.s32.totalorder %v500, 1
    %vm517 = vcmp.ge.s32.totalorder %v501, 1
    %vm518 = vcmp.ge.s32.totalorder %v502, 1
    %vm519 = vcmp.ge.s32.totalorder %v503, 1
    %vm520 = vcmp.ge.s32.totalorder %v504, 1
    %vm521 = vcmp.ge.s32.totalorder %v505, 1
    %vm522 = vcmp.ge.s32.totalorder %v506, 1
    %vm523 = vcmp.ge.s32.totalorder %v507, 1
    %vm524 = vcmp.ge.s32.totalorder %v508, 1
    %vm525 = vcmp.ge.s32.totalorder %v509, 1
    %vm526 = vcmp.ge.s32.totalorder %v510, 1
    %vm527 = vcmp.lt.s32.totalorder %v495, 7
    %vm528 = vcmp.lt.s32.totalorder %v496, 7
    %vm529 = vcmp.lt.s32.totalorder %v497, 7
    %vm530 = vcmp.lt.s32.totalorder %v498, 7
    %vm531 = vcmp.lt.s32.totalorder %v499, 7
    %vm532 = vcmp.lt.s32.totalorder %v500, 7
    %vm533 = vcmp.lt.s32.totalorder %v501, 7
    %vm534 = vcmp.lt.s32.totalorder %v502, 7
    %vm535 = vcmp.lt.s32.totalorder %v503, 7
    %vm536 = vcmp.lt.s32.totalorder %v504, 7
    %vm537 = vcmp.lt.s32.totalorder %v505, 7
    %vm538 = vcmp.lt.s32.totalorder %v506, 7
    %vm539 = vcmp.lt.s32.totalorder %v507, 7
    %vm540 = vcmp.lt.s32.totalorder %v508, 7
    %vm541 = vcmp.lt.s32.totalorder %v509, 7
    %vm542 = vcmp.lt.s32.totalorder %v510, 7
    %v543 = vld [vmem:[#allocation2 + $0x7] sm:$0xff]
    %v544 = vld [vmem:[#allocation2 + $0xf] sm:$0xff]
    %v545 = vld [vmem:[#allocation2 + $0x17] sm:$0xff]
    %v546 = vld [vmem:[#allocation2 + $0x1f] sm:$0xff]
    %v547 = vld [vmem:[#allocation2 + $0x27] sm:$0xff]
    %v548 = vld [vmem:[#allocation2 + $0x2f] sm:$0xff]
    %v549 = vld [vmem:[#allocation2 + $0x37] sm:$0xff]
    %v550 = vld [vmem:[#allocation2 + $0x3f] sm:$0xff]
    %v551 = vld [vmem:[%s289 + $0x7] sm:$0xff]
    %v552 = vld [vmem:[%s289 + $0xf] sm:$0xff]
    %v553 = vld [vmem:[%s289 + $0x17] sm:$0xff]
    %v554 = vld [vmem:[%s289 + $0x1f] sm:$0xff]
    %v555 = vld [vmem:[%s289 + $0x27] sm:$0xff]
    %v556 = vld [vmem:[%s289 + $0x2f] sm:$0xff]
    %v557 = vld [vmem:[%s289 + $0x37] sm:$0xff]
    %v558 = vld [vmem:[%s289 + $0x3f] sm:$0xff]
    %v559 = vsel %vm511, 1, 0
    %v560 = vsel %vm512, 1, 0
    %v561 = vsel %vm513, 1, 0
    %v562 = vsel %vm514, 1, 0
    %v563 = vsel %vm515, 1, 0
    %v564 = vsel %vm516, 1, 0
    %v565 = vsel %vm517, 1, 0
    %v566 = vsel %vm518, 1, 0
    %v567 = vsel %vm519, 1, 0
    %v568 = vsel %vm520, 1, 0
    %v569 = vsel %vm521, 1, 0
    %v570 = vsel %vm522, 1, 0
    %v571 = vsel %vm523, 1, 0
    %v572 = vsel %vm524, 1, 0
    %v573 = vsel %vm525, 1, 0
    %v574 = vsel %vm526, 1, 0
    %vm575 = vcmp.eq.s32.totalorder %v559, 1
    %vm576 = vcmp.eq.s32.totalorder %v560, 1
    %vm577 = vcmp.eq.s32.totalorder %v561, 1
    %vm578 = vcmp.eq.s32.totalorder %v562, 1
    %vm579 = vcmp.eq.s32.totalorder %v563, 1
    %vm580 = vcmp.eq.s32.totalorder %v564, 1
    %vm581 = vcmp.eq.s32.totalorder %v565, 1
    %vm582 = vcmp.eq.s32.totalorder %v566, 1
    %vm583 = vcmp.eq.s32.totalorder %v567, 1
    %vm584 = vcmp.eq.s32.totalorder %v568, 1
    %vm585 = vcmp.eq.s32.totalorder %v569, 1
    %vm586 = vcmp.eq.s32.totalorder %v570, 1
    %vm587 = vcmp.eq.s32.totalorder %v571, 1
    %vm588 = vcmp.eq.s32.totalorder %v572, 1
    %vm589 = vcmp.eq.s32.totalorder %v573, 1
    %vm590 = vcmp.eq.s32.totalorder %v574, 1
    %v591 = vsel %vm575, %v543, 0.0
    %v592 = vsel %vm576, %v544, 0.0
    %v593 = vsel %vm577, %v545, 0.0
    %v594 = vsel %vm578, %v546, 0.0
    %v595 = vsel %vm579, %v547, 0.0
    %v596 = vsel %vm580, %v548, 0.0
    %v597 = vsel %vm581, %v549, 0.0
    %v598 = vsel %vm582, %v550, 0.0
    %v599 = vsel %vm583, %v551, 0.0
    %v600 = vsel %vm584, %v552, 0.0
    %v601 = vsel %vm585, %v553, 0.0
    %v602 = vsel %vm586, %v554, 0.0
    %v603 = vsel %vm587, %v555, 0.0
    %v604 = vsel %vm588, %v556, 0.0
    %v605 = vsel %vm589, %v557, 0.0
    %v606 = vsel %vm590, %v558, 0.0
    %v607 = vpack.c.bf16 %v592, %v591
    %v608 = vpack.c.bf16 %v594, %v593
    %v609 = vpack.c.bf16 %v596, %v595
    %v610 = vpack.c.bf16 %v598, %v597
    %v611 = vpack.c.bf16 %v600, %v599
    %v612 = vpack.c.bf16 %v602, %v601
    %v613 = vpack.c.bf16 %v604, %v603
    %v614 = vpack.c.bf16 %v606, %v605
    %v615 = vld [vmem:[#allocation2 + $0x8] sm:$0xff]
    %v616 = vld [vmem:[#allocation2 + $0x10] sm:$0xff]
    %v617 = vld [vmem:[#allocation2 + $0x18] sm:$0xff]
    %v618 = vld [vmem:[#allocation2 + $0x20] sm:$0xff]
    %v619 = vld [vmem:[#allocation2 + $0x28] sm:$0xff]
    %v620 = vld [vmem:[#allocation2 + $0x30] sm:$0xff]
    %v621 = vld [vmem:[#allocation2 + $0x38] sm:$0xff]
    %v622 = vld [vmem:[#allocation2 + $0x40] sm:$0xff]
    %v623 = vld [vmem:[%s289 + $0x8] sm:$0xff]
    %v624 = vld [vmem:[%s289 + $0x10] sm:$0xff]
    %v625 = vld [vmem:[%s289 + $0x18] sm:$0xff]
    %v626 = vld [vmem:[%s289 + $0x20] sm:$0xff]
    %v627 = vld [vmem:[%s289 + $0x28] sm:$0xff]
    %v628 = vld [vmem:[%s289 + $0x30] sm:$0xff]
    %v629 = vld [vmem:[%s289 + $0x38] sm:$0xff]
    %v630 = vld [vmem:[%s289 + $0x40] sm:$0xff]
    %v631 = vpack.c.bf16 %v616, %v615
    %v632 = vpack.c.bf16 %v618, %v617
    %v633 = vpack.c.bf16 %v620, %v619
    %v634 = vpack.c.bf16 %v622, %v621
    %v635 = vpack.c.bf16 %v624, %v623
    %v636 = vpack.c.bf16 %v626, %v625
    %v637 = vpack.c.bf16 %v628, %v627
    %v638 = vpack.c.bf16 %v630, %v629
    %v639 = vld [vmem:[#allocation2 + $0x9] sm:$0xff]
    %v640 = vld [vmem:[#allocation2 + $0x11] sm:$0xff]
    %v641 = vld [vmem:[#allocation2 + $0x19] sm:$0xff]
    %v642 = vld [vmem:[#allocation2 + $0x21] sm:$0xff]
    %v643 = vld [vmem:[#allocation2 + $0x29] sm:$0xff]
    %v644 = vld [vmem:[#allocation2 + $0x31] sm:$0xff]
    %v645 = vld [vmem:[#allocation2 + $0x39] sm:$0xff]
    %v646 = vld [vmem:[#allocation2 + $0x41] sm:$0xff]
    %v647 = vld [vmem:[%s289 + $0x9] sm:$0xff]
    %v648 = vld [vmem:[%s289 + $0x11] sm:$0xff]
    %v649 = vld [vmem:[%s289 + $0x19] sm:$0xff]
    %v650 = vld [vmem:[%s289 + $0x21] sm:$0xff]
    %v651 = vld [vmem:[%s289 + $0x29] sm:$0xff]
    %v652 = vld [vmem:[%s289 + $0x31] sm:$0xff]
    %v653 = vld [vmem:[%s289 + $0x39] sm:$0xff]
    %v654 = vld [vmem:[%s289 + $0x41] sm:$0xff]
    %v655 = vsel %vm527, 1, 0
    %v656 = vsel %vm528, 1, 0
    %v657 = vsel %vm529, 1, 0
    %v658 = vsel %vm530, 1, 0
    %v659 = vsel %vm531, 1, 0
    %v660 = vsel %vm532, 1, 0
    %v661 = vsel %vm533, 1, 0
    %v662 = vsel %vm534, 1, 0
    %v663 = vsel %vm535, 1, 0
    %v664 = vsel %vm536, 1, 0
    %v665 = vsel %vm537, 1, 0
    %v666 = vsel %vm538, 1, 0
    %v667 = vsel %vm539, 1, 0
    %v668 = vsel %vm540, 1, 0
    %v669 = vsel %vm541, 1, 0
    %v670 = vsel %vm542, 1, 0
    %vm671 = vcmp.eq.s32.totalorder %v655, 1
    %vm672 = vcmp.eq.s32.totalorder %v656, 1
    %vm673 = vcmp.eq.s32.totalorder %v657, 1
    %vm674 = vcmp.eq.s32.totalorder %v658, 1
    %vm675 = vcmp.eq.s32.totalorder %v659, 1
    %vm676 = vcmp.eq.s32.totalorder %v660, 1
    %vm677 = vcmp.eq.s32.totalorder %v661, 1
    %vm678 = vcmp.eq.s32.totalorder %v662, 1
    %vm679 = vcmp.eq.s32.totalorder %v663, 1
    %vm680 = vcmp.eq.s32.totalorder %v664, 1
    %vm681 = vcmp.eq.s32.totalorder %v665, 1
    %vm682 = vcmp.eq.s32.totalorder %v666, 1
    %vm683 = vcmp.eq.s32.totalorder %v667, 1
    %vm684 = vcmp.eq.s32.totalorder %v668, 1
    %vm685 = vcmp.eq.s32.totalorder %v669, 1
    %vm686 = vcmp.eq.s32.totalorder %v670, 1
    %v687 = vsel %vm671, %v639, 0.0
    %v688 = vsel %vm672, %v640, 0.0
    %v689 = vsel %vm673, %v641, 0.0
    %v690 = vsel %vm674, %v642, 0.0
    %v691 = vsel %vm675, %v643, 0.0
    %v692 = vsel %vm676, %v644, 0.0
    %v693 = vsel %vm677, %v645, 0.0
    %v694 = vsel %vm678, %v646, 0.0
    %v695 = vsel %vm679, %v647, 0.0
    %v696 = vsel %vm680, %v648, 0.0
    %v697 = vsel %vm681, %v649, 0.0
    %v698 = vsel %vm682, %v650, 0.0
    %v699 = vsel %vm683, %v651, 0.0
    %v700 = vsel %vm684, %v652, 0.0
    %v701 = vsel %vm685, %v653, 0.0
    %v702 = vsel %vm686, %v654, 0.0
    %v703 = vpack.c.bf16 %v688, %v687
    %v704 = vpack.c.bf16 %v690, %v689
    %v705 = vpack.c.bf16 %v692, %v691
    %v706 = vpack.c.bf16 %v694, %v693
    %v707 = vpack.c.bf16 %v696, %v695
    %v708 = vpack.c.bf16 %v698, %v697
    %v709 = vpack.c.bf16 %v700, %v699
    %v710 = vpack.c.bf16 %v702, %v701
    %v711 = vld [vmem:[#allocation2 + $0x47] sm:$0xff]
    %v712 = vld [vmem:[%s289 + $0x47] sm:$0xff]
    %v713 = vsel %vm575, %v544, 0.0
    %v714 = vsel %vm576, %v545, 0.0
    %v715 = vsel %vm577, %v546, 0.0
    %v716 = vsel %vm578, %v547, 0.0
    %v717 = vsel %vm579, %v548, 0.0
    %v718 = vsel %vm580, %v549, 0.0
    %v719 = vsel %vm581, %v550, 0.0
    %v720 = vsel %vm582, %v711, 0.0
    %v721 = vsel %vm583, %v552, 0.0
    %v722 = vsel %vm584, %v553, 0.0
    %v723 = vsel %vm585, %v554, 0.0
    %v724 = vsel %vm586, %v555, 0.0
    %v725 = vsel %vm587, %v556, 0.0
    %v726 = vsel %vm588, %v557, 0.0
    %v727 = vsel %vm589, %v558, 0.0
    %v728 = vsel %vm590, %v712, 0.0
    %v729 = vpack.c.bf16 %v714, %v713
    %v730 = vpack.c.bf16 %v716, %v715
    %v731 = vpack.c.bf16 %v718, %v717
    %v732 = vpack.c.bf16 %v720, %v719
    %v733 = vpack.c.bf16 %v722, %v721
    %v734 = vpack.c.bf16 %v724, %v723
    %v735 = vpack.c.bf16 %v726, %v725
    %v736 = vpack.c.bf16 %v728, %v727
    %v737 = vld [vmem:[#allocation2 + $0x48] sm:$0xff]
    %v738 = vld [vmem:[%s289 + $0x48] sm:$0xff]
    %v739 = vpack.c.bf16 %v617, %v616
    %v740 = vpack.c.bf16 %v619, %v618
    %v741 = vpack.c.bf16 %v621, %v620
    %v742 = vpack.c.bf16 %v737, %v622
    %v743 = vpack.c.bf16 %v625, %v624
    %v744 = vpack.c.bf16 %v627, %v626
    %v745 = vpack.c.bf16 %v629, %v628
    %v746 = vpack.c.bf16 %v738, %v630
    %v747 = vld [vmem:[#allocation2 + $0x49] sm:$0xff]
    %v748 = vld [vmem:[%s289 + $0x49] sm:$0xff]
    %v749 = vsel %vm671, %v640, 0.0
    %v750 = vsel %vm672, %v641, 0.0
    %v751 = vsel %vm673, %v642, 0.0
    %v752 = vsel %vm674, %v643, 0.0
    %v753 = vsel %vm675, %v644, 0.0
    %v754 = vsel %vm676, %v645, 0.0
    %v755 = vsel %vm677, %v646, 0.0
    %v756 = vsel %vm678, %v747, 0.0
    %v757 = vsel %vm679, %v648, 0.0
    %v758 = vsel %vm680, %v649, 0.0
    %v759 = vsel %vm681, %v650, 0.0
    %v760 = vsel %vm682, %v651, 0.0
    %v761 = vsel %vm683, %v652, 0.0
    %v762 = vsel %vm684, %v653, 0.0
    %v763 = vsel %vm685, %v654, 0.0
    %v764 = vsel %vm686, %v748, 0.0
    %v765 = vpack.c.bf16 %v750, %v749
    %v766 = vpack.c.bf16 %v752, %v751
    %v767 = vpack.c.bf16 %v754, %v753
    %v768 = vpack.c.bf16 %v756, %v755
    %v769 = vpack.c.bf16 %v758, %v757
    %v770 = vpack.c.bf16 %v760, %v759
    %v771 = vpack.c.bf16 %v762, %v761
    %v772 = vpack.c.bf16 %v764, %v763
    %v773 = vld [vmem:[#allocation2 + $0x4f] sm:$0xff]
    %v774 = vld [vmem:[%s289 + $0x4f] sm:$0xff]
    %v775 = vsel %vm575, %v545, 0.0
    %v776 = vsel %vm576, %v546, 0.0
    %v777 = vsel %vm577, %v547, 0.0
    %v778 = vsel %vm578, %v548, 0.0
    %v779 = vsel %vm579, %v549, 0.0
    %v780 = vsel %vm580, %v550, 0.0
    %v781 = vsel %vm581, %v711, 0.0
    %v782 = vsel %vm582, %v773, 0.0
    %v783 = vsel %vm583, %v553, 0.0
    %v784 = vsel %vm584, %v554, 0.0
    %v785 = vsel %vm585, %v555, 0.0
    %v786 = vsel %vm586, %v556, 0.0
    %v787 = vsel %vm587, %v557, 0.0
    %v788 = vsel %vm588, %v558, 0.0
    %v789 = vsel %vm589, %v712, 0.0
    %v790 = vsel %vm590, %v774, 0.0
    %v791 = vpack.c.bf16 %v776, %v775
    %v792 = vpack.c.bf16 %v778, %v777
    %v793 = vpack.c.bf16 %v780, %v779
    %v794 = vpack.c.bf16 %v782, %v781
    %v795 = vpack.c.bf16 %v784, %v783
    %v796 = vpack.c.bf16 %v786, %v785
    %v797 = vpack.c.bf16 %v788, %v787
    %v798 = vpack.c.bf16 %v790, %v789
    %v799 = vld [vmem:[#allocation2 + $0x50] sm:$0xff]
    %v800 = vld [vmem:[%s289 + $0x50] sm:$0xff]
    %v801 = vpack.c.bf16 %v799, %v737
    %v802 = vpack.c.bf16 %v800, %v738
    %v803 = vld [vmem:[#allocation2 + $0x51] sm:$0xff]
    %v804 = vld [vmem:[%s289 + $0x51] sm:$0xff]
    %v805 = vsel %vm671, %v641, 0.0
    %v806 = vsel %vm672, %v642, 0.0
    %v807 = vsel %vm673, %v643, 0.0
    %v808 = vsel %vm674, %v644, 0.0
    %v809 = vsel %vm675, %v645, 0.0
    %v810 = vsel %vm676, %v646, 0.0
    %v811 = vsel %vm677, %v747, 0.0
    %v812 = vsel %vm678, %v803, 0.0
    %v813 = vsel %vm679, %v649, 0.0
    %v814 = vsel %vm680, %v650, 0.0
    %v815 = vsel %vm681, %v651, 0.0
    %v816 = vsel %vm682, %v652, 0.0
    %v817 = vsel %vm683, %v653, 0.0
    %v818 = vsel %vm684, %v654, 0.0
    %v819 = vsel %vm685, %v748, 0.0
    %v820 = vsel %vm686, %v804, 0.0
    %v821 = vpack.c.bf16 %v806, %v805
    %v822 = vpack.c.bf16 %v808, %v807
    %v823 = vpack.c.bf16 %v810, %v809
    %v824 = vpack.c.bf16 %v812, %v811
    %v825 = vpack.c.bf16 %v814, %v813
    %v826 = vpack.c.bf16 %v816, %v815
    %v827 = vpack.c.bf16 %v818, %v817
    %v828 = vpack.c.bf16 %v820, %v819
    %837 = vrot.lane.b32.xlu0 %v631, 32
    %v838 = vpop.permute.xlu0 %837
    %839 = vrot.lane.b32.xlu0 %v632, 32
    %v840 = vpop.permute.xlu0 %839
    %841 = vrot.lane.b32.xlu0 %v633, 32
    %v842 = vpop.permute.xlu0 %841
    %843 = vrot.lane.b32.xlu0 %v634, 32
    %v844 = vpop.permute.xlu0 %843
    %845 = vrot.lane.b32.xlu0 %v635, 32
    %v846 = vpop.permute.xlu0 %845
    %847 = vrot.lane.b32.xlu0 %v636, 32
    %v848 = vpop.permute.xlu0 %847
    %849 = vrot.lane.b32.xlu0 %v637, 32
    %v850 = vpop.permute.xlu0 %849
    %851 = vrot.lane.b32.xlu0 %v638, 32
    %v852 = vpop.permute.xlu0 %851
    %861 = vrot.lane.b32.xlu0 %v703, 64
    %v862 = vpop.permute.xlu0 %861
    %863 = vrot.lane.b32.xlu0 %v704, 64
    %v864 = vpop.permute.xlu0 %863
    %865 = vrot.lane.b32.xlu0 %v705, 64
    %v866 = vpop.permute.xlu0 %865
    %867 = vrot.lane.b32.xlu0 %v706, 64
    %v868 = vpop.permute.xlu0 %867
    %869 = vrot.lane.b32.xlu0 %v707, 64
    %v870 = vpop.permute.xlu0 %869
    %871 = vrot.lane.b32.xlu0 %v708, 64
    %v872 = vpop.permute.xlu0 %871
    %873 = vrot.lane.b32.xlu0 %v709, 64
    %v874 = vpop.permute.xlu0 %873
    %875 = vrot.lane.b32.xlu0 %v710, 64
    %v876 = vpop.permute.xlu0 %875
    %885 = vrot.lane.b32.xlu0 %v729, 96
    %v886 = vpop.permute.xlu0 %885
    %887 = vrot.lane.b32.xlu0 %v730, 96
    %v888 = vpop.permute.xlu0 %887
    %889 = vrot.lane.b32.xlu0 %v731, 96
    %v890 = vpop.permute.xlu0 %889
    %891 = vrot.lane.b32.xlu0 %v732, 96
    %v892 = vpop.permute.xlu0 %891
    %893 = vrot.lane.b32.xlu0 %v733, 96
    %v894 = vpop.permute.xlu0 %893
    %895 = vrot.lane.b32.xlu0 %v734, 96
    %v896 = vpop.permute.xlu0 %895
    %897 = vrot.lane.b32.xlu0 %v735, 96
    %v898 = vpop.permute.xlu0 %897
    %899 = vrot.lane.b32.xlu0 %v736, 96
    %v900 = vpop.permute.xlu0 %899
    %909 = vrot.lane.b32.xlu0 %v765, 32
    %v910 = vpop.permute.xlu0 %909
    %911 = vrot.lane.b32.xlu0 %v766, 32
    %v912 = vpop.permute.xlu0 %911
    %913 = vrot.lane.b32.xlu0 %v767, 32
    %v914 = vpop.permute.xlu0 %913
    %915 = vrot.lane.b32.xlu0 %v768, 32
    %v916 = vpop.permute.xlu0 %915
    %917 = vrot.lane.b32.xlu0 %v769, 32
    %v918 = vpop.permute.xlu0 %917
    %919 = vrot.lane.b32.xlu0 %v770, 32
    %v920 = vpop.permute.xlu0 %919
    %921 = vrot.lane.b32.xlu0 %v771, 32
    %v922 = vpop.permute.xlu0 %921
    %923 = vrot.lane.b32.xlu0 %v772, 32
    %v924 = vpop.permute.xlu0 %923
    %933 = vrot.lane.b32.xlu0 %v791, 64
    %v934 = vpop.permute.xlu0 %933
    %935 = vrot.lane.b32.xlu0 %v792, 64
    %v936 = vpop.permute.xlu0 %935
    %937 = vrot.lane.b32.xlu0 %v793, 64
    %v938 = vpop.permute.xlu0 %937
    %939 = vrot.lane.b32.xlu0 %v794, 64
    %v940 = vpop.permute.xlu0 %939
    %941 = vrot.lane.b32.xlu0 %v795, 64
    %v942 = vpop.permute.xlu0 %941
    %943 = vrot.lane.b32.xlu0 %v796, 64
    %v944 = vpop.permute.xlu0 %943
    %945 = vrot.lane.b32.xlu0 %v797, 64
    %v946 = vpop.permute.xlu0 %945
    %947 = vrot.lane.b32.xlu0 %v798, 64
    %v948 = vpop.permute.xlu0 %947
    %951 = vrot.lane.b32.xlu0 %v632, 96
    %v952 = vpop.permute.xlu0 %951
    %953 = vrot.lane.b32.xlu0 %v633, 96
    %v954 = vpop.permute.xlu0 %953
    %955 = vrot.lane.b32.xlu0 %v634, 96
    %v956 = vpop.permute.xlu0 %955
    %957 = vrot.lane.b32.xlu0 %v801, 96
    %v958 = vpop.permute.xlu0 %957
    %959 = vrot.lane.b32.xlu0 %v636, 96
    %v960 = vpop.permute.xlu0 %959
    %961 = vrot.lane.b32.xlu0 %v637, 96
    %v962 = vpop.permute.xlu0 %961
    %963 = vrot.lane.b32.xlu0 %v638, 96
    %v964 = vpop.permute.xlu0 %963
    %965 = vrot.lane.b32.xlu0 %v802, 96
    %v966 = vpop.permute.xlu0 %965
    %v969 = vsel %vm276, %v607, %v838
    %v972 = vsel %vm276, %v608, %v840
    %v975 = vsel %vm276, %v609, %v842
    %v978 = vsel %vm276, %v610, %v844
    %v981 = vsel %vm276, %v611, %v846
    %v984 = vsel %vm276, %v612, %v848
    %v987 = vsel %vm276, %v613, %v850
    %v990 = vsel %vm276, %v614, %v852
    %vm991 = vcmask 523264
    %v993 = vsel %vm991, %v969, %v862
    %v995 = vsel %vm991, %v972, %v864
    %v997 = vsel %vm991, %v975, %v866
    %v999 = vsel %vm991, %v978, %v868
    %v1001 = vsel %vm991, %v981, %v870
    %v1003 = vsel %vm991, %v984, %v872
    %v1005 = vsel %vm991, %v987, %v874
    %v1007 = vsel %vm991, %v990, %v876
    %vm1008 = vcmask 785408
    %v1010 = vsel %vm1008, %v993, %v886
    %v1013 = vsel %vm1008, %v995, %v888
    %v1016 = vsel %vm1008, %v997, %v890
    %v1019 = vsel %vm1008, %v999, %v892
    %v1022 = vsel %vm1008, %v1001, %v894
    %v1025 = vsel %vm1008, %v1003, %v896
    %v1028 = vsel %vm1008, %v1005, %v898
    %v1031 = vsel %vm1008, %v1007, %v900
    %v1035 = vsel %vm276, %v739, %v910
    %v1038 = vsel %vm276, %v740, %v912
    %v1041 = vsel %vm276, %v741, %v914
    %v1044 = vsel %vm276, %v742, %v916
    %v1047 = vsel %vm276, %v743, %v918
    %v1050 = vsel %vm276, %v744, %v920
    %v1053 = vsel %vm276, %v745, %v922
    %v1056 = vsel %vm276, %v746, %v924
    %v1058 = vsel %vm991, %v1035, %v934
    %v1060 = vsel %vm991, %v1038, %v936
    %v1062 = vsel %vm991, %v1041, %v938
    %v1064 = vsel %vm991, %v1044, %v940
    %v1066 = vsel %vm991, %v1047, %v942
    %v1068 = vsel %vm991, %v1050, %v944
    %v1070 = vsel %vm991, %v1053, %v946
    %v1072 = vsel %vm991, %v1056, %v948
    %v1074 = vsel %vm1008, %v1058, %v952
    %v1077 = vsel %vm1008, %v1060, %v954
    %v1080 = vsel %vm1008, %v1062, %v956
    %v1083 = vsel %vm1008, %v1064, %v958
    %v1086 = vsel %vm1008, %v1066, %v960
    %v1089 = vsel %vm1008, %v1068, %v962
    %v1092 = vsel %vm1008, %v1070, %v964
    %v1095 = vsel %vm1008, %v1072, %v966
    %v1097 = vld [vmem:[%s3] sm:$0xf]
    %v1098 = vld [vmem:[%s3 + $0x4] sm:$0xf]
    %v1099 = vld [vmem:[%s3 + $0x8] sm:$0xf]
    %v1100 = vld [vmem:[%s3 + $0xc] sm:$0xf]
    %v1101 = vld [vmem:[%s3 + $0x10] sm:$0xf]
    %v1102 = vld [vmem:[%s3 + $0x14] sm:$0xf]
    %v1103 = vld [vmem:[%s3 + $0x18] sm:$0xf]
    %v1104 = vld [vmem:[%s3 + $0x1c] sm:$0xf]
    %v1105 = vld [vmem:[%s3 + $0x20] sm:$0xf]
    %v1106 = vld [vmem:[%s3 + $0x24] sm:$0xf]
    %v1107 = vld [vmem:[%s3 + $0x28] sm:$0xf]
    %v1108 = vld [vmem:[%s3 + $0x2c] sm:$0xf]
    %v1109 = vld [vmem:[%s3 + $0x30] sm:$0xf]
    %v1110 = vld [vmem:[%s3 + $0x34] sm:$0xf]
    %v1111 = vld [vmem:[%s3 + $0x38] sm:$0xf]
    %v1112 = vld [vmem:[%s3 + $0x3c] sm:$0xf]
    %v1113 = vld [vmem:[%s3 + $0x40] sm:$0xf]
    %v1114 = vld [vmem:[%s3 + $0x44] sm:$0xf]
    %v1115 = vld [vmem:[%s3 + $0x48] sm:$0xf]
    %v1116 = vld [vmem:[%s3 + $0x4c] sm:$0xf]
    %v1117 = vld [vmem:[%s3 + $0x50] sm:$0xf]
    %v1118 = vld [vmem:[%s3 + $0x54] sm:$0xf]
    %v1119 = vld [vmem:[%s3 + $0x58] sm:$0xf]
    %v1120 = vld [vmem:[%s3 + $0x5c] sm:$0xf]
    %v1121 = vld [vmem:[%s3 + $0x60] sm:$0xf]
    %v1122 = vld [vmem:[%s3 + $0x64] sm:$0xf]
    %v1123 = vld [vmem:[%s3 + $0x68] sm:$0xf]
    %v1124 = vld [vmem:[%s3 + $0x6c] sm:$0xf]
    %v1125 = vld [vmem:[%s3 + $0x70] sm:$0xf]
    %v1126 = vld [vmem:[%s3 + $0x74] sm:$0xf]
    %v1127 = vld [vmem:[%s3 + $0x78] sm:$0xf]
    %v1128 = vld [vmem:[%s3 + $0x7c] sm:$0xf]
    %v1129 = vld [vmem:[%s3 + $0x80] sm:$0xf]
    %v1130 = vld [vmem:[%s3 + $0x84] sm:$0xf]
    %v1131 = vld [vmem:[%s3 + $0x88] sm:$0xf]
    %v1132 = vld [vmem:[%s3 + $0x8c] sm:$0xf]
    %v1133 = vld [vmem:[%s4] sm:$0x1]
    %v1135 = vlaneseq
    %v1136 = vshrl.u32 %v1135, 7
    %v1137 = vsub.s32 0, %v1136
    %v1138 = vrot.slane %v1133, %v1137
    %v1176 = vunpack.c.l.b16 %v1097
    %v1177 = vunpack.c.l.b16 %v1098
    %v1178 = vunpack.c.l.b16 %v1099
    %v1179 = vunpack.c.l.b16 %v1100
    %v1180 = vunpack.c.l.b16 %v1101
    %v1181 = vunpack.c.l.b16 %v1102
    %v1182 = vunpack.c.l.b16 %v1103
    %v1183 = vunpack.c.l.b16 %v1104
    %v1184 = vunpack.c.l.b16 %v1105
    %v1185 = vunpack.c.l.b16 %v1106
    %v1186 = vunpack.c.l.b16 %v1107
    %v1187 = vunpack.c.l.b16 %v1108
    %v1188 = vunpack.c.l.b16 %v1109
    %v1189 = vunpack.c.l.b16 %v1110
    %v1190 = vunpack.c.l.b16 %v1111
    %v1191 = vunpack.c.l.b16 %v1112
    %v1192 = vunpack.c.l.b16 %v1113
    %v1193 = vunpack.c.l.b16 %v1114
    %v1194 = vunpack.c.l.b16 %v1115
    %v1195 = vunpack.c.l.b16 %v1116
    %v1196 = vunpack.c.l.b16 %v1117
    %v1197 = vunpack.c.l.b16 %v1118
    %v1198 = vunpack.c.l.b16 %v1119
    %v1199 = vunpack.c.l.b16 %v1120
    %v1200 = vunpack.c.l.b16 %v1121
    %v1201 = vunpack.c.l.b16 %v1122
    %v1202 = vunpack.c.l.b16 %v1123
    %v1203 = vunpack.c.l.b16 %v1124
    %v1204 = vunpack.c.l.b16 %v1125
    %v1205 = vunpack.c.l.b16 %v1126
    %v1206 = vunpack.c.l.b16 %v1127
    %v1207 = vunpack.c.l.b16 %v1128
    %v1208 = vunpack.c.l.b16 %v1129
    %v1209 = vunpack.c.l.b16 %v1130
    %v1210 = vunpack.c.l.b16 %v1131
    %v1211 = vunpack.c.l.b16 %v1132
    %v1212 = vpack.c.b16 %v1177, %v1176
    %v1213 = vpack.c.b16 %v1179, %v1178
    %v1214 = vpack.c.b16 %v1181, %v1180
    %v1215 = vpack.c.b16 %v1183, %v1182
    %v1216 = vpack.c.b16 %v1185, %v1184
    %v1217 = vpack.c.b16 %v1187, %v1186
    %v1218 = vpack.c.b16 %v1189, %v1188
    %v1219 = vpack.c.b16 %v1191, %v1190
    %v1220 = vpack.c.b16 %v1193, %v1192
    %v1221 = vpack.c.b16 %v1195, %v1194
    %v1222 = vpack.c.b16 %v1197, %v1196
    %v1223 = vpack.c.b16 %v1199, %v1198
    %v1224 = vpack.c.b16 %v1201, %v1200
    %v1225 = vpack.c.b16 %v1203, %v1202
    %v1226 = vpack.c.b16 %v1205, %v1204
    %v1227 = vpack.c.b16 %v1207, %v1206
    %v1228 = vpack.c.b16 %v1209, %v1208
    %v1229 = vpack.c.b16 %v1211, %v1210
    %v1249 = vsel %vm276, %v821, 0
    %v1252 = vsel %vm276, %v822, 0
    %v1255 = vsel %vm276, %v823, 0
    %v1258 = vsel %vm276, %v824, 0
    %v1261 = vsel %vm276, %v825, 0
    %v1264 = vsel %vm276, %v826, 0
    %v1267 = vsel %vm276, %v827, 0
    %v1270 = vsel %vm276, %v828, 0
    %1272 = vmatprep.subr.bf16.mxu0 0
    %1273 = vmatpush1.bf16.msra.mxu0 %v1212
    %1274 = vmatprep.subr.bf16.mxu0 0
    %1275 = vmatpush1.bf16.msra.mxu0 %v1213
    %1276 = vmatprep.subr.bf16.mxu0 0
    %1277 = vmatpush1.bf16.msra.mxu0 %v1214
    %1278 = vmatprep.subr.bf16.mxu0 0
    %1279 = vmatpush1.bf16.msra.mxu0 %v1215
    %1280 = vmatprep.subr.bf16.mxu0 0
    %1281 = vmatpush1.bf16.msra.mxu0 %v1216
    %1282 = vmatprep.subr.bf16.mxu0 0
    %1283 = vmatpush1.bf16.msra.mxu0 %v1217
    %1284 = vmatprep.subr.bf16.mxu0 0
    %1285 = vmatpush1.bf16.msra.mxu0 %v1218
    %1286 = vmatprep.subr.bf16.mxu0 0
    %1287 = vmatpush1.bf16.msra.mxu0 %v1219
    %1288 = vmatprep.subr.bf16.mxu0 0
    %1289 = vmatpush1.bf16.msra.mxu0 %v1220
    %1290 = vmatprep.subr.bf16.mxu0 0
    %1291 = vmatpush1.bf16.msra.mxu0 %v1221
    %1292 = vmatprep.subr.bf16.mxu0 0
    %1293 = vmatpush1.bf16.msra.mxu0 %v1222
    %1294 = vmatprep.subr.bf16.mxu0 0
    %1295 = vmatpush1.bf16.msra.mxu0 %v1223
    %1296 = vmatprep.subr.bf16.mxu0 0
    %1297 = vmatpush1.bf16.msra.mxu0 %v1224
    %1298 = vmatprep.subr.bf16.mxu0 0
    %1299 = vmatpush1.bf16.msra.mxu0 %v1225
    %1300 = vmatprep.subr.bf16.mxu0 0
    %1301 = vmatpush1.bf16.msra.mxu0 %v1226
    %1302 = vmatprep.subr.bf16.mxu0 0
    %1303 = vmatpush1.bf16.msra.mxu0 %v1227
    %1304 = vmatprep.mubr.bf16.mxu0 %v1074
    %1305 = vmatmul.mubr.bf16.gmra.mrb[0].mxu0 %v1010
    %v1306 = vpop.f32.mrb[0].mxu0
    %v1307 = vadd.f32 %v1138, %v1306
    %v1308 = vpop.f32.mrb[0].mxu0
    %v1309 = vpop.f32.mrb[0].mxu0
    %v1310 = vadd.f32 %v1138, %v1309
    %v1311 = vpop.f32.mrb[0].mxu0
    %1312 = vmatprep.mubr.bf16.mxu0 %v1077
    %1313 = vmatmul.mubr.bf16.gmra.mrb[0].mxu0 %v1013
    %v1314 = vpop.f32.mrb[0].mxu0
    %v1315 = vadd.f32 %v1138, %v1314
    %v1316 = vpop.f32.mrb[0].mxu0
    %v1317 = vpop.f32.mrb[0].mxu0
    %v1318 = vadd.f32 %v1138, %v1317
    %v1319 = vpop.f32.mrb[0].mxu0
    %1320 = vmatprep.mubr.bf16.mxu0 %v1080
    %1321 = vmatmul.mubr.bf16.gmra.mrb[0].mxu0 %v1016
    %v1322 = vpop.f32.mrb[0].mxu0
    %v1323 = vadd.f32 %v1138, %v1322
    %v1324 = vpop.f32.mrb[0].mxu0
    %v1325 = vpop.f32.mrb[0].mxu0
    %v1326 = vadd.f32 %v1138, %v1325
    %v1327 = vpop.f32.mrb[0].mxu0
    %1328 = vmatprep.mubr.bf16.mxu0 %v1083
    %1329 = vmatmul.mubr.bf16.gmra.mrb[0].mxu0 %v1019
    %v1330 = vpop.f32.mrb[0].mxu0
    %v1331 = vadd.f32 %v1138, %v1330
    %v1332 = vpop.f32.mrb[0].mxu0
    %v1333 = vpop.f32.mrb[0].mxu0
    %v1334 = vadd.f32 %v1138, %v1333
    %v1335 = vpop.f32.mrb[0].mxu0
    %1336 = vmatprep.mubr.bf16.mxu0 %v1086
    %1337 = vmatmul.mubr.bf16.gmra.mrb[0].mxu0 %v1022
    %v1338 = vpop.f32.mrb[0].mxu0
    %v1339 = vadd.f32 %v1138, %v1338
    %v1340 = vpop.f32.mrb[0].mxu0
    %v1341 = vpop.f32.mrb[0].mxu0
    %v1342 = vadd.f32 %v1138, %v1341
    %v1343 = vpop.f32.mrb[0].mxu0
    %1344 = vmatprep.mubr.bf16.mxu0 %v1089
    %1345 = vmatmul.mubr.bf16.gmra.mrb[0].mxu0 %v1025
    %v1346 = vpop.f32.mrb[0].mxu0
    %v1347 = vadd.f32 %v1138, %v1346
    %v1348 = vpop.f32.mrb[0].mxu0
    %v1349 = vpop.f32.mrb[0].mxu0
    %v1350 = vadd.f32 %v1138, %v1349
    %v1351 = vpop.f32.mrb[0].mxu0
    %1352 = vmatprep.mubr.bf16.mxu0 %v1092
    %1353 = vmatmul.mubr.bf16.gmra.mrb[0].mxu0 %v1028
    %v1354 = vpop.f32.mrb[0].mxu0
    %v1355 = vadd.f32 %v1138, %v1354
    %v1356 = vpop.f32.mrb[0].mxu0
    %v1357 = vpop.f32.mrb[0].mxu0
    %v1358 = vadd.f32 %v1138, %v1357
    %v1359 = vpop.f32.mrb[0].mxu0
    %1360 = vmatprep.mubr.bf16.mxu0 %v1095
    %1361 = vmatmul.mubr.bf16.gmra.mrb[0].mxu0 %v1031
    %v1362 = vpop.f32.mrb[0].mxu0
    %v1363 = vadd.f32 %v1138, %v1362
    %v1364 = vpop.f32.mrb[0].mxu0
    %v1365 = vpop.f32.mrb[0].mxu0
    %v1366 = vadd.f32 %v1138, %v1365
    %v1367 = vpop.f32.mrb[0].mxu0
    %1368 = vdwg.mxu0
    %1369 = vmatprep.subr.bf16.mxu0 0
    %1370 = vmatpush1.bf16.msra.mxu0 %v1228
    %1371 = vmatprep.subr.bf16.mxu0 0
    %1372 = vmatpush1.bf16.msra.mxu0 %v1229
    %1373 = vmatprep.subr.bf16.mxu0 0
    %1374 = vmatpush1.bf16.msra.mxu0 0
    %1375 = vmatprep.subr.bf16.mxu0 0
    %1376 = vmatpush1.bf16.msra.mxu0 0
    %1377 = vmatprep.subr.bf16.mxu0 0
    %1378 = vmatpush1.bf16.msra.mxu0 0
    %1379 = vmatprep.subr.bf16.mxu0 0
    %1380 = vmatpush1.bf16.msra.mxu0 0
    %1381 = vmatprep.subr.bf16.mxu0 0
    %1382 = vmatpush1.bf16.msra.mxu0 0
    %1383 = vmatprep.subr.bf16.mxu0 0
    %1384 = vmatpush1.bf16.msra.mxu0 0
    %1385 = vmatprep.subr.bf16.mxu0 0
    %1386 = vmatpush1.bf16.msra.mxu0 0
    %1387 = vmatprep.subr.bf16.mxu0 0
    %1388 = vmatpush1.bf16.msra.mxu0 0
    %1389 = vmatprep.subr.bf16.mxu0 0
    %1390 = vmatpush1.bf16.msra.mxu0 0
    %1391 = vmatprep.subr.bf16.mxu0 0
    %1392 = vmatpush1.bf16.msra.mxu0 0
    %1393 = vmatprep.subr.bf16.mxu0 0
    %1394 = vmatpush1.bf16.msra.mxu0 0
    %1395 = vmatprep.subr.bf16.mxu0 0
    %1396 = vmatpush1.bf16.msra.mxu0 0
    %1397 = vmatprep.subr.bf16.mxu0 0
    %1398 = vmatpush1.bf16.msra.mxu0 0
    %1399 = vmatprep.subr.bf16.mxu0 0
    %1400 = vmatpush1.bf16.msra.mxu0 0
    %1401 = vmatprep.mubr.bf16.mxu0 0
    %1402 = vmatmul.mubr.bf16.gmra.mrb[0].mxu0 %v1249
    %v1403 = vpop.f32.mrb[0].mxu0
    %v1404 = vadd.f32 %v1307, %v1403
    %v1405 = vpop.f32.mrb[0].mxu0
    %v1406 = vpop.f32.mrb[0].mxu0
    %v1407 = vadd.f32 %v1310, %v1406
    %v1408 = vpop.f32.mrb[0].mxu0
    %1409 = vmatprep.mubr.bf16.mxu0 0
    %1410 = vmatmul.mubr.bf16.gmra.mrb[0].mxu0 %v1252
    %v1411 = vpop.f32.mrb[0].mxu0
    %v1412 = vadd.f32 %v1315, %v1411
    %v1413 = vpop.f32.mrb[0].mxu0
    %v1414 = vpop.f32.mrb[0].mxu0
    %v1415 = vadd.f32 %v1318, %v1414
    %v1416 = vpop.f32.mrb[0].mxu0
    %1417 = vmatprep.mubr.bf16.mxu0 0
    %1418 = vmatmul.mubr.bf16.gmra.mrb[0].mxu0 %v1255
    %v1419 = vpop.f32.mrb[0].mxu0
    %v1420 = vadd.f32 %v1323, %v1419
    %v1421 = vpop.f32.mrb[0].mxu0
    %v1422 = vpop.f32.mrb[0].mxu0
    %v1423 = vadd.f32 %v1326, %v1422
    %v1424 = vpop.f32.mrb[0].mxu0
    %1425 = vmatprep.mubr.bf16.mxu0 0
    %1426 = vmatmul.mubr.bf16.gmra.mrb[0].mxu0 %v1258
    %v1427 = vpop.f32.mrb[0].mxu0
    %v1428 = vadd.f32 %v1331, %v1427
    %v1429 = vpop.f32.mrb[0].mxu0
    %v1430 = vpop.f32.mrb[0].mxu0
    %v1431 = vadd.f32 %v1334, %v1430
    %v1432 = vpop.f32.mrb[0].mxu0
    %1433 = vmatprep.mubr.bf16.mxu0 0
    %1434 = vmatmul.mubr.bf16.gmra.mrb[0].mxu0 %v1261
    %v1435 = vpop.f32.mrb[0].mxu0
    %v1436 = vadd.f32 %v1339, %v1435
    %v1437 = vpop.f32.mrb[0].mxu0
    %v1438 = vpop.f32.mrb[0].mxu0
    %v1439 = vadd.f32 %v1342, %v1438
    %v1440 = vpop.f32.mrb[0].mxu0
    %1441 = vmatprep.mubr.bf16.mxu0 0
    %1442 = vmatmul.mubr.bf16.gmra.mrb[0].mxu0 %v1264
    %v1443 = vpop.f32.mrb[0].mxu0
    %v1444 = vadd.f32 %v1347, %v1443
    %v1445 = vpop.f32.mrb[0].mxu0
    %v1446 = vpop.f32.mrb[0].mxu0
    %v1447 = vadd.f32 %v1350, %v1446
    %v1448 = vpop.f32.mrb[0].mxu0
    %1449 = vmatprep.mubr.bf16.mxu0 0
    %1450 = vmatmul.mubr.bf16.gmra.mrb[0].mxu0 %v1267
    %v1451 = vpop.f32.mrb[0].mxu0
    %v1452 = vadd.f32 %v1355, %v1451
    %v1453 = vpop.f32.mrb[0].mxu0
    %v1454 = vpop.f32.mrb[0].mxu0
    %v1455 = vadd.f32 %v1358, %v1454
    %v1456 = vpop.f32.mrb[0].mxu0
    %1457 = vmatprep.mubr.bf16.mxu0 0
    %1458 = vmatmul.mubr.bf16.gmra.mrb[0].mxu0 %v1270
    %v1459 = vpop.f32.mrb[0].mxu0
    %v1460 = vadd.f32 %v1363, %v1459
    %v1461 = vpop.f32.mrb[0].mxu0
    %v1462 = vpop.f32.mrb[0].mxu0
    %v1463 = vadd.f32 %v1366, %v1462
    %v1464 = vpop.f32.mrb[0].mxu0
    %1465 = vdwg.mxu0
    %v1466 = vmax.f32 %v1404, 0.0
    %v1467 = vmax.f32 %v1407, 0.0
    %v1468 = vmax.f32 %v1412, 0.0
    %v1469 = vmax.f32 %v1415, 0.0
    %v1470 = vmax.f32 %v1420, 0.0
    %v1471 = vmax.f32 %v1423, 0.0
    %v1472 = vmax.f32 %v1428, 0.0
    %v1473 = vmax.f32 %v1431, 0.0
    %v1474 = vmax.f32 %v1436, 0.0
    %v1475 = vmax.f32 %v1439, 0.0
    %v1476 = vmax.f32 %v1444, 0.0
    %v1477 = vmax.f32 %v1447, 0.0
    %v1478 = vmax.f32 %v1452, 0.0
    %v1479 = vmax.f32 %v1455, 0.0
    %v1480 = vmax.f32 %v1460, 0.0
    %v1481 = vmax.f32 %v1463, 0.0
    %v1482 = vpack.c.bf16 %v1467, %v1466
    %v1483 = vpack.c.bf16 %v1469, %v1468
    %v1484 = vpack.c.bf16 %v1471, %v1470
    %v1485 = vpack.c.bf16 %v1473, %v1472
    %v1486 = vpack.c.bf16 %v1475, %v1474
    %v1487 = vpack.c.bf16 %v1477, %v1476
    %v1488 = vpack.c.bf16 %v1479, %v1478
    %v1489 = vpack.c.bf16 %v1481, %v1480
    %v1490 = vld [vmem:[%s5] sm:$0xf]
    %v1491 = vld [vmem:[%s5 + $0x4] sm:$0xf]
    %v1492 = vld [vmem:[%s5 + $0x8] sm:$0xf]
    %v1493 = vld [vmem:[%s5 + $0xc] sm:$0xf]
    %v1494 = vld [vmem:[%s6] sm:$0x1]
    %v1496 = vlaneseq
    %v1497 = vshrl.u32 %v1496, 7
    %v1498 = vsub.s32 0, %v1497
    %v1499 = vrot.slane %v1494, %v1498
    %v1505 = vunpack.c.l.b16 %v1490
    %v1506 = vunpack.c.l.b16 %v1491
    %v1507 = vunpack.c.l.b16 %v1492
    %v1508 = vunpack.c.l.b16 %v1493
    %v1509 = vpack.c.b16 %v1506, %v1505
    %v1510 = vpack.c.b16 %v1508, %v1507
    %v1514 = vsel %vm276, %v1482, 0
    %v1517 = vsel %vm276, %v1483, 0
    %v1520 = vsel %vm276, %v1484, 0
    %v1523 = vsel %vm276, %v1485, 0
    %v1526 = vsel %vm276, %v1486, 0
    %v1529 = vsel %vm276, %v1487, 0
    %v1532 = vsel %vm276, %v1488, 0
    %v1535 = vsel %vm276, %v1489, 0
    %1537 = vmatprep.subr.bf16.mxu0 0
    %1538 = vmatpush1.bf16.msra.mxu0 %v1509
    %1539 = vmatprep.subr.bf16.mxu0 0
    %1540 = vmatpush1.bf16.msra.mxu0 %v1510
    %1541 = vmatprep.subr.bf16.mxu0 0
    %1542 = vmatpush1.bf16.msra.mxu0 0
    %1543 = vmatprep.subr.bf16.mxu0 0
    %1544 = vmatpush1.bf16.msra.mxu0 0
    %1545 = vmatprep.subr.bf16.mxu0 0
    %1546 = vmatpush1.bf16.msra.mxu0 0
    %1547 = vmatprep.subr.bf16.mxu0 0
    %1548 = vmatpush1.bf16.msra.mxu0 0
    %1549 = vmatprep.subr.bf16.mxu0 0
    %1550 = vmatpush1.bf16.msra.mxu0 0
    %1551 = vmatprep.subr.bf16.mxu0 0
    %1552 = vmatpush1.bf16.msra.mxu0 0
    %1553 = vmatprep.subr.bf16.mxu0 0
    %1554 = vmatpush1.bf16.msra.mxu0 0
    %1555 = vmatprep.subr.bf16.mxu0 0
    %1556 = vmatpush1.bf16.msra.mxu0 0
    %1557 = vmatprep.subr.bf16.mxu0 0
    %1558 = vmatpush1.bf16.msra.mxu0 0
    %1559 = vmatprep.subr.bf16.mxu0 0
    %1560 = vmatpush1.bf16.msra.mxu0 0
    %1561 = vmatprep.subr.bf16.mxu0 0
    %1562 = vmatpush1.bf16.msra.mxu0 0
    %1563 = vmatprep.subr.bf16.mxu0 0
    %1564 = vmatpush1.bf16.msra.mxu0 0
    %1565 = vmatprep.subr.bf16.mxu0 0
    %1566 = vmatpush1.bf16.msra.mxu0 0
    %1567 = vmatprep.subr.bf16.mxu0 0
    %1568 = vmatpush1.bf16.msra.mxu0 0
    %1569 = vmatprep.mubr.bf16.mxu0 0
    %1570 = vmatmul.mubr.bf16.gmra.mrb[0].mxu0 %v1514
    %v1571 = vpop.f32.mrb[0].mxu0
    %v1572 = vadd.f32 %v1499, %v1571
    %v1573 = vpop.f32.mrb[0].mxu0
    %v1574 = vpop.f32.mrb[0].mxu0
    %v1575 = vadd.f32 %v1499, %v1574
    %v1576 = vpop.f32.mrb[0].mxu0
    %1577 = vmatprep.mubr.bf16.mxu0 0
    %1578 = vmatmul.mubr.bf16.gmra.mrb[0].mxu0 %v1517
    %v1579 = vpop.f32.mrb[0].mxu0
    %v1580 = vadd.f32 %v1499, %v1579
    %v1581 = vpop.f32.mrb[0].mxu0
    %v1582 = vpop.f32.mrb[0].mxu0
    %v1583 = vadd.f32 %v1499, %v1582
    %v1584 = vpop.f32.mrb[0].mxu0
    %1585 = vmatprep.mubr.bf16.mxu0 0
    %1586 = vmatmul.mubr.bf16.gmra.mrb[0].mxu0 %v1520
    %v1587 = vpop.f32.mrb[0].mxu0
    %v1588 = vadd.f32 %v1499, %v1587
    %v1589 = vpop.f32.mrb[0].mxu0
    %v1590 = vpop.f32.mrb[0].mxu0
    %v1591 = vadd.f32 %v1499, %v1590
    %v1592 = vpop.f32.mrb[0].mxu0
    %1593 = vmatprep.mubr.bf16.mxu0 0
    %1594 = vmatmul.mubr.bf16.gmra.mrb[0].mxu0 %v1523
    %v1595 = vpop.f32.mrb[0].mxu0
    %v1596 = vadd.f32 %v1499, %v1595
    %v1597 = vpop.f32.mrb[0].mxu0
    %v1598 = vpop.f32.mrb[0].mxu0
    %v1599 = vadd.f32 %v1499, %v1598
    %v1600 = vpop.f32.mrb[0].mxu0
    %1601 = vmatprep.mubr.bf16.mxu0 0
    %1602 = vmatmul.mubr.bf16.gmra.mrb[0].mxu0 %v1526
    %v1603 = vpop.f32.mrb[0].mxu0
    %v1604 = vadd.f32 %v1499, %v1603
    %v1605 = vpop.f32.mrb[0].mxu0
    %v1606 = vpop.f32.mrb[0].mxu0
    %v1607 = vadd.f32 %v1499, %v1606
    %v1608 = vpop.f32.mrb[0].mxu0
    %1609 = vmatprep.mubr.bf16.mxu0 0
    %1610 = vmatmul.mubr.bf16.gmra.mrb[0].mxu0 %v1529
    %v1611 = vpop.f32.mrb[0].mxu0
    %v1612 = vadd.f32 %v1499, %v1611
    %v1613 = vpop.f32.mrb[0].mxu0
    %v1614 = vpop.f32.mrb[0].mxu0
    %v1615 = vadd.f32 %v1499, %v1614
    %v1616 = vpop.f32.mrb[0].mxu0
    %1617 = vmatprep.mubr.bf16.mxu0 0
    %1618 = vmatmul.mubr.bf16.gmra.mrb[0].mxu0 %v1532
    %v1619 = vpop.f32.mrb[0].mxu0
    %v1620 = vadd.f32 %v1499, %v1619
    %v1621 = vpop.f32.mrb[0].mxu0
    %v1622 = vpop.f32.mrb[0].mxu0
    %v1623 = vadd.f32 %v1499, %v1622
    %v1624 = vpop.f32.mrb[0].mxu0
    %1625 = vmatprep.mubr.bf16.mxu0 0
    %1626 = vmatmul.mubr.bf16.gmra.mrb[0].mxu0 %v1535
    %v1627 = vpop.f32.mrb[0].mxu0
    %v1628 = vadd.f32 %v1499, %v1627
    %v1629 = vpop.f32.mrb[0].mxu0
    %v1630 = vpop.f32.mrb[0].mxu0
    %v1631 = vadd.f32 %v1499, %v1630
    %v1632 = vpop.f32.mrb[0].mxu0
    %1633 = vdwg.mxu0
    %v1634 = vunpack.c.l.bf16 %v28
    %v1635 = vunpack.c.l.bf16 %v29
    %v1636 = vunpack.c.l.bf16 %v30
    %v1637 = vunpack.c.l.bf16 %v31
    %v1638 = vunpack.c.l.bf16 %v32
    %v1639 = vunpack.c.l.bf16 %v33
    %v1640 = vunpack.c.l.bf16 %v34
    %v1641 = vunpack.c.l.bf16 %v35
    %v1642 = vunpack.c.l.bf16 %v36
    %v1643 = vunpack.c.l.bf16 %v37
    %v1644 = vunpack.c.l.bf16 %v38
    %v1645 = vunpack.c.l.bf16 %v39
    %v1646 = vunpack.c.l.bf16 %v40
    %v1647 = vunpack.c.l.bf16 %v41
    %v1648 = vunpack.c.l.bf16 %v42
    %v1649 = vunpack.c.l.bf16 %v43
    %v1650 = vadd.f32 %v1572, %v1634
    %v1651 = vadd.f32 %v1575, %v1635
    %v1652 = vadd.f32 %v1580, %v1636
    %v1653 = vadd.f32 %v1583, %v1637
    %v1654 = vadd.f32 %v1588, %v1638
    %v1655 = vadd.f32 %v1591, %v1639
    %v1656 = vadd.f32 %v1596, %v1640
    %v1657 = vadd.f32 %v1599, %v1641
    %v1658 = vadd.f32 %v1604, %v1642
    %v1659 = vadd.f32 %v1607, %v1643
    %v1660 = vadd.f32 %v1612, %v1644
    %v1661 = vadd.f32 %v1615, %v1645
    %v1662 = vadd.f32 %v1620, %v1646
    %v1663 = vadd.f32 %v1623, %v1647
    %v1664 = vadd.f32 %v1628, %v1648
    %v1665 = vadd.f32 %v1631, %v1649
    %v1666 = vmax.f32 %v1650, 0.0
    %v1667 = vmax.f32 %v1651, 0.0
    %v1668 = vmax.f32 %v1652, 0.0
    %v1669 = vmax.f32 %v1653, 0.0
    %v1670 = vmax.f32 %v1654, 0.0
    %v1671 = vmax.f32 %v1655, 0.0
    %v1672 = vmax.f32 %v1656, 0.0
    %v1673 = vmax.f32 %v1657, 0.0
    %v1674 = vmax.f32 %v1658, 0.0
    %v1675 = vmax.f32 %v1659, 0.0
    %v1676 = vmax.f32 %v1660, 0.0
    %v1677 = vmax.f32 %v1661, 0.0
    %v1678 = vmax.f32 %v1662, 0.0
    %v1679 = vmax.f32 %v1663, 0.0
    %v1680 = vmax.f32 %v1664, 0.0
    %v1681 = vmax.f32 %v1665, 0.0
    %v1682 = vpack.c.bf16 %v1667, %v1666
    %v1683 = vpack.c.bf16 %v1669, %v1668
    %v1684 = vpack.c.bf16 %v1671, %v1670
    %v1685 = vpack.c.bf16 %v1673, %v1672
    %v1686 = vpack.c.bf16 %v1675, %v1674
    %v1687 = vpack.c.bf16 %v1677, %v1676
    %v1688 = vpack.c.bf16 %v1679, %v1678
    %v1689 = vpack.c.bf16 %v1681, %v1680
    %v1698 = vunpack.c.l.b16 %v1682
    %v1699 = vunpack.c.h.b16 %v1682
    %v1700 = vunpack.c.l.b16 %v1683
    %v1701 = vunpack.c.h.b16 %v1683
    %v1702 = vunpack.c.l.b16 %v1684
    %v1703 = vunpack.c.h.b16 %v1684
    %v1704 = vunpack.c.l.b16 %v1685
    %v1705 = vunpack.c.h.b16 %v1685
    %v1706 = vunpack.c.l.b16 %v1686
    %v1707 = vunpack.c.h.b16 %v1686
    %v1708 = vunpack.c.l.b16 %v1687
    %v1709 = vunpack.c.h.b16 %v1687
    %v1710 = vunpack.c.l.b16 %v1688
    %v1711 = vunpack.c.h.b16 %v1688
    %v1712 = vunpack.c.l.b16 %v1689
    %v1713 = vunpack.c.h.b16 %v1689
    %v1714 = vpack.c.b16 %v1698, %v1698
    %v1715 = vpack.c.b16 %v1699, %v1699
    %v1716 = vpack.c.b16 %v1700, %v1700
    %v1717 = vpack.c.b16 %v1701, %v1701
    %v1718 = vpack.c.b16 %v1702, %v1702
    %v1719 = vpack.c.b16 %v1703, %v1703
    %v1720 = vpack.c.b16 %v1704, %v1704
    %v1721 = vpack.c.b16 %v1705, %v1705
    %v1722 = vpack.c.b16 %v1706, %v1706
    %v1723 = vpack.c.b16 %v1707, %v1707
    %v1724 = vpack.c.b16 %v1708, %v1708
    %v1725 = vpack.c.b16 %v1709, %v1709
    %v1726 = vpack.c.b16 %v1710, %v1710
    %v1727 = vpack.c.b16 %v1711, %v1711
    %v1728 = vpack.c.b16 %v1712, %v1712
    %v1729 = vpack.c.b16 %v1713, %v1713
    %1746 = vst [vmem:[#allocation3] sm:$0xf] %v1714
    %1747 = vst [vmem:[#allocation3 + $0x4] sm:$0xf] %v1715
    %1748 = vst [vmem:[#allocation3 + $0x8] sm:$0xf] %v1716
    %1749 = vst [vmem:[#allocation3 + $0xc] sm:$0xf] %v1717
    %1750 = vst [vmem:[#allocation3 + $0x10] sm:$0xf] %v1718
    %1751 = vst [vmem:[#allocation3 + $0x14] sm:$0xf] %v1719
    %1752 = vst [vmem:[#allocation3 + $0x18] sm:$0xf] %v1720
    %1753 = vst [vmem:[#allocation3 + $0x1c] sm:$0xf] %v1721
    %1754 = vst [vmem:[#allocation3 + $0x20] sm:$0xf] %v1722
    %1755 = vst [vmem:[#allocation3 + $0x24] sm:$0xf] %v1723
    %1756 = vst [vmem:[#allocation3 + $0x28] sm:$0xf] %v1724
    %1757 = vst [vmem:[#allocation3 + $0x2c] sm:$0xf] %v1725
    %1758 = vst [vmem:[#allocation3 + $0x30] sm:$0xf] %v1726
    %1759 = vst [vmem:[#allocation3 + $0x34] sm:$0xf] %v1727
    %1760 = vst [vmem:[#allocation3 + $0x38] sm:$0xf] %v1728
    %1761 = vst [vmem:[#allocation3 + $0x3c] sm:$0xf] %v1729
    // Predicated region
    $region30: #{tpu_custom_call.1} parent=1 // pred_check
      _
    $region31: #{tpu_custom_call.1} parent=1 // pred_check_branch
      %1763 = sbr.rel (0) target = $region33
    $region32: #{tpu_custom_call.1} parent=1 // pred_region
      %s1765 = ssub.s32 1024, 1024
      %1766 = vsyncadd [#allocation4], %s1765
      %s1767 = sshll.u32 [#allocation3], 4
      %s1768 = int_to_ptr.vmem [resolvable:$true] %s1767
      %1773 = dma.vmem_to_hbm [thread:$0]  %s1768, 1024, %s7, [#allocation4], 64, 64, 4
    $region33: #{tpu_custom_call.1} parent=1 // pred_fallthru
      _
    // Predicated region
    $region34: #{tpu_custom_call.1} parent=1 // pred_check
      _
    $region35: #{tpu_custom_call.1} parent=1 // pred_check_branch
      %1775 = sbr.rel (0) target = $region37
    $region36: #{tpu_custom_call.1} parent=1 // pred_region
      %1776 = dma.done [#allocation4], 1024
    $region37: #{tpu_custom_call.1} parent=1 // pred_fallthru
      _
    %1777 = vsyncpa [#allocation4], 1

</llo_original>
